<compile_context>
chip_gen: v6e
topology: v6e:2x2x1
jax: 0.10.0
libtpu: 0.0.40
codegen_flags: <defaults>
</compile_context>

<pallas_src>
import functools

import jax
import jax.numpy as jnp
import numpy as np
from jax.experimental import pallas as pl
from jax.experimental.pallas import tpu as pltpu


# ----------------------------------------------------------------------------
# Kernel
# ----------------------------------------------------------------------------
def _loopy_bp_kernel(node_feat_ref, edge_feat_ref,
                     n2e_ref, e2e_ref, e2n_ref, subg_ref,
                     w_n2l_ref, b_n2l_ref, w_e2l_ref, b_e2l_ref,
                     w_conv_ref, b_conv_ref, w_out_ref, b_out_ref,
                     out_ref, *, max_lv):
    f32 = jnp.float32
    bf16 = jnp.bfloat16

    # ---- input potentials (node->edge) -------------------------------------
    node_lin = jnp.dot(node_feat_ref[...], w_n2l_ref[...],
                       preferred_element_type=f32) + b_n2l_ref[...]        # (N, L) f32
    n2epool = jnp.dot(n2e_ref[...], node_lin.astype(bf16),
                      preferred_element_type=f32)                          # (E, L)
    edge_lin = jnp.dot(edge_feat_ref[...], w_e2l_ref[...],
                       preferred_element_type=f32) + b_e2l_ref[...]        # (E, L)
    input_message = n2epool + edge_lin
    cur = jnp.maximum(input_message, 0.0)                                  # input potential

    e2e = e2e_ref[...]
    w_conv = w_conv_ref[...]
    b_conv = b_conv_ref[...]

    # ---- loopy BP levels (static unroll, max_lv is small) ------------------
    for _ in range(max_lv):
        e2epool = jnp.dot(e2e, cur.astype(bf16), preferred_element_type=f32)
        conv = jnp.dot(e2epool.astype(bf16), w_conv,
                       preferred_element_type=f32) + b_conv
        cur = jnp.maximum(conv + input_message, 0.0)

    # ---- edge->node pooling, output layer, graph pooling -------------------
    e2npool = jnp.dot(e2n_ref[...], cur.astype(bf16), preferred_element_type=f32)
    hidden = jnp.maximum(e2npool, 0.0)
    out_lin = jnp.dot(hidden.astype(bf16), w_out_ref[...],
                      preferred_element_type=f32) + b_out_ref[...]
    reluact = jnp.maximum(out_lin, 0.0)
    y = jnp.dot(subg_ref[...], reluact.astype(bf16), preferred_element_type=f32)
    out_ref[...] = jnp.maximum(y, 0.0).astype(out_ref.dtype)


# ----------------------------------------------------------------------------
# Wrapper
# ----------------------------------------------------------------------------
def _round_up(x, m):
    return ((x + m - 1) // m) * m


def _pad2d(a, rows, cols, dtype):
    a = jnp.asarray(a, dtype)
    return jnp.pad(a, ((0, rows - a.shape[0]), (0, cols - a.shape[1])))


@functools.partial(jax.jit, static_argnames=("max_lv",))
def embed_loopy_bp_forward(node_feat, edge_feat, n2e, e2e, e2n, subg, params,
                           max_lv=3):
    """Dense loopy-BP forward.  Weights in params are pre-transposed (in, out)."""
    (w_n2l, b_n2l, w_e2l, b_e2l, w_conv, b_conv, w_out, b_out) = params

    N, Fn = node_feat.shape
    E, Fe = edge_feat.shape
    G = subg.shape[0]
    L = w_n2l.shape[1]
    D = w_out.shape[1]

    LANE, SUB = 128, 8
    Np, Ep = _round_up(N, LANE), _round_up(E, LANE)        # also contraction dims
    Gp = _round_up(G, SUB)
    Fnp, Fep = _round_up(Fn, LANE), _round_up(Fe, LANE)
    Lp, Dp = _round_up(L, LANE), _round_up(D, LANE)

    bf16, f32 = jnp.bfloat16, jnp.float32
    inputs = [
        _pad2d(node_feat, Np, Fnp, bf16),
        _pad2d(edge_feat, Ep, Fep, bf16),
        _pad2d(n2e, Ep, Np, bf16),
        _pad2d(e2e, Ep, Ep, bf16),
        _pad2d(e2n, Np, Ep, bf16),
        _pad2d(subg, Gp, Np, bf16),
        _pad2d(w_n2l, Fnp, Lp, bf16),
        _pad2d(b_n2l, 1, Lp, f32),
        _pad2d(w_e2l, Fep, Lp, bf16),
        _pad2d(b_e2l, 1, Lp, f32),
        _pad2d(w_conv, Lp, Lp, bf16),
        _pad2d(b_conv, 1, Lp, f32),
        _pad2d(w_out, Lp, Dp, bf16),
        _pad2d(b_out, 1, Dp, f32),
    ]

    flops = 2 * (Np * Fnp * Lp + Ep * Np * Lp + Ep * Fep * Lp
                 + max_lv * (Ep * Ep * Lp + Ep * Lp * Lp)
                 + Np * Ep * Lp + Np * Lp * Dp + Gp * Np * Dp)
    bytes_accessed = sum(int(a.size) * a.dtype.itemsize for a in inputs) + Gp * Dp * 4

    out_padded = pl.pallas_call(
        functools.partial(_loopy_bp_kernel, max_lv=max_lv),
        out_shape=jax.ShapeDtypeStruct((Gp, Dp), jnp.float32),
        grid=(1,),
        in_specs=[pl.BlockSpec(a.shape, lambda i: (0, 0)) for a in inputs],
        out_specs=pl.BlockSpec((Gp, Dp), lambda i: (0, 0)),
        compiler_params=pltpu.CompilerParams(
            dimension_semantics=("arbitrary",),
            vmem_limit_bytes=32 << 20),
        cost_estimate=pl.CostEstimate(
            flops=flops, transcendentals=0, bytes_accessed=bytes_accessed),
    )(*inputs)

    return out_padded[:G, :D]


# ----------------------------------------------------------------------------
# Pure-JAX reference with the same bf16-operand / f32-accumulate discipline
# ----------------------------------------------------------------------------
def reference_forward(node_feat, edge_feat, n2e, e2e, e2n, subg, params,
                      max_lv=3):
    (w_n2l, b_n2l, w_e2l, b_e2l, w_conv, b_conv, w_out, b_out) = params

    def mm(a, b):
        return jnp.dot(a.astype(jnp.bfloat16), b.astype(jnp.bfloat16),
                       preferred_element_type=jnp.float32)

    node_lin = mm(node_feat, w_n2l) + b_n2l
    input_message = mm(n2e, node_lin) + mm(edge_feat, w_e2l) + b_e2l
    cur = jnp.maximum(input_message, 0.0)
    for _ in range(max_lv):
        cur = jnp.maximum(mm(mm(e2e, cur), w_conv) + b_conv + input_message, 0.0)
    hidden = jnp.maximum(mm(e2n, cur), 0.0)
    reluact = jnp.maximum(mm(hidden, w_out) + b_out, 0.0)
    return jnp.maximum(mm(subg, reluact), 0.0)


def glorot_uniform(key, fan_in, fan_out):
    # Mirrors the module's glorot_uniform for 2-D weights (limit is symmetric in
    # fan_in/fan_out, so storing the weight pre-transposed (in, out) is exact).
    limit = float(np.sqrt(6.0 / (fan_in + fan_out)))
    return jax.random.uniform(key, (fan_in, fan_out), jnp.float32, -limit, limit)


# ----------------------------------------------------------------------------
# Main
# ----------------------------------------------------------------------------
if __name__ == "__main__":
    # --- toy graph batch: a 5-node cycle and a 4-node path --------------------
    graphs = [
        [(0, 1), (1, 2), (2, 3), (3, 4), (4, 0)],   # graph 0: 5-node cycle
        [(0, 1), (1, 2), (2, 3)],                   # graph 1: 4-node path
    ]
    graph_n_nodes = [5, 4]

    node_off = 0
    edges = []          # directed edges, global node ids
    node2graph = []
    for g, (elist, nn_g) in enumerate(zip(graphs, graph_n_nodes)):
        node2graph += [g] * nn_g
        for (u, v) in elist:
            edges.append((node_off + u, node_off + v))
            edges.append((node_off + v, node_off + u))
        node_off += nn_g
    N, E, G = node_off, len(edges), len(graphs)     # 9 nodes, 16 edges, 2 graphs

    # Dense loopy-BP operators (S2VLIB.PrepareLoopyBP equivalents, built densely).
    n2e = np.zeros((E, N), np.float32)
    e2e = np.zeros((E, E), np.float32)
    e2n = np.zeros((N, E), np.float32)
    subg = np.zeros((G, N), np.float32)
    for i, (u, v) in enumerate(edges):
        n2e[i, u] = 1.0                 # edge (u->v) starts from node u's features
        e2n[v, i] = 1.0                 # node v pools incoming-edge messages
        for j, (a, b) in enumerate(edges):
            if b == u and a != v:       # (a->u) feeds (u->v), excluding the reverse
                e2e[i, j] = 1.0
    for n, g in enumerate(node2graph):
        subg[g, n] = 1.0

    # --- model config ---------------------------------------------------------
    latent_dim, output_dim = 64, 32
    num_node_feats, num_edge_feats = 16, 8
    max_lv = 3

    key = jax.random.PRNGKey(0)
    kx, ke, k1, k2, k3, k4 = jax.random.split(key, 6)

    node_feat = jax.random.normal(kx, (N, num_node_feats), jnp.float32)
    edge_feat = jax.random.normal(ke, (E, num_edge_feats), jnp.float32)

    # weights_init: glorot_uniform weights, zero biases.  Stored pre-transposed
    # (in, out) and biases as (1, out) so no per-call transpose/reshape is needed.
    params = (
        glorot_uniform(k1, num_node_feats, latent_dim),
        jnp.zeros((1, latent_dim), jnp.float32),
        glorot_uniform(k2, num_edge_feats, latent_dim),
        jnp.zeros((1, latent_dim), jnp.float32),
        glorot_uniform(k3, latent_dim, latent_dim),
        jnp.zeros((1, latent_dim), jnp.float32),
        glorot_uniform(k4, latent_dim, output_dim),
        jnp.zeros((1, output_dim), jnp.float32),
    )

    n2e_j = jnp.asarray(n2e)
    e2e_j = jnp.asarray(e2e)
    e2n_j = jnp.asarray(e2n)
    subg_j = jnp.asarray(subg)

    out = embed_loopy_bp_forward(node_feat, edge_feat, n2e_j, e2e_j, e2n_j,
                                 subg_j, params, max_lv=max_lv)
    out = jax.block_until_ready(out)

    ref = reference_forward(node_feat, edge_feat, n2e_j, e2e_j, e2n_j,
                            subg_j, params, max_lv=max_lv)
    ref = jax.block_until_ready(ref)

    assert out.shape == (G, output_dim)
    assert jnp.allclose(out, ref, atol=2e-3, rtol=2e-3), "mismatch vs reference"

    print("KERNEL_OK")
</pallas_src>

<mosaic_0001>
module attributes {stable_mosaic.version = 11 : i64} {
  func.func @_loopy_bp_kernel(%arg0: i32, %arg1: memref<128x128xbf16, #tpu.memory_space<vmem>>, %arg2: memref<128x128xbf16, #tpu.memory_space<vmem>>, %arg3: memref<128x128xbf16, #tpu.memory_space<vmem>>, %arg4: memref<128x128xbf16, #tpu.memory_space<vmem>>, %arg5: memref<128x128xbf16, #tpu.memory_space<vmem>>, %arg6: memref<8x128xbf16, #tpu.memory_space<vmem>>, %arg7: memref<128x128xbf16, #tpu.memory_space<vmem>>, %arg8: memref<1x128xf32, #tpu.memory_space<vmem>>, %arg9: memref<128x128xbf16, #tpu.memory_space<vmem>>, %arg10: memref<1x128xf32, #tpu.memory_space<vmem>>, %arg11: memref<128x128xbf16, #tpu.memory_space<vmem>>, %arg12: memref<1x128xf32, #tpu.memory_space<vmem>>, %arg13: memref<128x128xbf16, #tpu.memory_space<vmem>>, %arg14: memref<1x128xf32, #tpu.memory_space<vmem>>, %arg15: memref<8x128xf32, #tpu.memory_space<vmem>>) attributes {dimension_semantics = [#tpu.dimension_semantics<arbitrary>], iteration_bounds = array<i64: 1>, scalar_prefetch = 0 : i64, scratch_operands = 0 : i64, tpu.core_type = #tpu.core_type<tc>, window_params = [{pipeline_mode = #tpu.pipeline_mode<synchronous>, transform_indices = @transform_0, window_bounds = array<i64: 128, 128>}, {pipeline_mode = #tpu.pipeline_mode<synchronous>, transform_indices = @transform_1, window_bounds = array<i64: 128, 128>}, {pipeline_mode = #tpu.pipeline_mode<synchronous>, transform_indices = @transform_2, window_bounds = array<i64: 128, 128>}, {pipeline_mode = #tpu.pipeline_mode<synchronous>, transform_indices = @transform_3, window_bounds = array<i64: 128, 128>}, {pipeline_mode = #tpu.pipeline_mode<synchronous>, transform_indices = @transform_4, window_bounds = array<i64: 128, 128>}, {pipeline_mode = #tpu.pipeline_mode<synchronous>, transform_indices = @transform_5, window_bounds = array<i64: 8, 128>}, {pipeline_mode = #tpu.pipeline_mode<synchronous>, transform_indices = @transform_6, window_bounds = array<i64: 128, 128>}, {pipeline_mode = #tpu.pipeline_mode<synchronous>, transform_indices = @transform_7, window_bounds = array<i64: 1, 128>}, {pipeline_mode = #tpu.pipeline_mode<synchronous>, transform_indices = @transform_8, window_bounds = array<i64: 128, 128>}, {pipeline_mode = #tpu.pipeline_mode<synchronous>, transform_indices = @transform_9, window_bounds = array<i64: 1, 128>}, {pipeline_mode = #tpu.pipeline_mode<synchronous>, transform_indices = @transform_10, window_bounds = array<i64: 128, 128>}, {pipeline_mode = #tpu.pipeline_mode<synchronous>, transform_indices = @transform_11, window_bounds = array<i64: 1, 128>}, {pipeline_mode = #tpu.pipeline_mode<synchronous>, transform_indices = @transform_12, window_bounds = array<i64: 128, 128>}, {pipeline_mode = #tpu.pipeline_mode<synchronous>, transform_indices = @transform_13, window_bounds = array<i64: 1, 128>}, {pipeline_mode = #tpu.pipeline_mode<synchronous>, transform_indices = @transform_14, window_bounds = array<i64: 8, 128>}]} {
    %c0 = arith.constant 0 : index
    %c0_0 = arith.constant 0 : index
    %0 = vector.load %arg1[%c0, %c0_0] : memref<128x128xbf16, #tpu.memory_space<vmem>>, vector<128x128xbf16>
    %c0_1 = arith.constant 0 : index
    %c0_2 = arith.constant 0 : index
    %1 = vector.load %arg7[%c0_1, %c0_2] : memref<128x128xbf16, #tpu.memory_space<vmem>>, vector<128x128xbf16>
    %cst = arith.constant dense<0.000000e+00> : vector<128x128xf32>
    %2 = tpu.matmul %0, %1, %cst {dimension_numbers = #tpu.dot_dimension_numbers<[1], [0], [0], [1], [0, 0, 1, 1], [], []>} : vector<128x128xbf16>, vector<128x128xbf16>, vector<128x128xf32> -> vector<128x128xf32>
    %c0_3 = arith.constant 0 : index
    %c0_4 = arith.constant 0 : index
    %3 = vector.load %arg8[%c0_3, %c0_4] : memref<1x128xf32, #tpu.memory_space<vmem>>, vector<1x128xf32>
    %4 = vector.broadcast %3 : vector<1x128xf32> to vector<128x128xf32>
    %5 = arith.addf %2, %4 : vector<128x128xf32>
    %c0_5 = arith.constant 0 : index
    %c0_6 = arith.constant 0 : index
    %6 = vector.load %arg3[%c0_5, %c0_6] : memref<128x128xbf16, #tpu.memory_space<vmem>>, vector<128x128xbf16>
    %7 = arith.truncf %5 : vector<128x128xf32> to vector<128x128xbf16>
    %cst_7 = arith.constant dense<0.000000e+00> : vector<128x128xf32>
    %8 = tpu.matmul %6, %7, %cst_7 {dimension_numbers = #tpu.dot_dimension_numbers<[1], [0], [0], [1], [0, 0, 1, 1], [], []>} : vector<128x128xbf16>, vector<128x128xbf16>, vector<128x128xf32> -> vector<128x128xf32>
    %c0_8 = arith.constant 0 : index
    %c0_9 = arith.constant 0 : index
    %9 = vector.load %arg2[%c0_8, %c0_9] : memref<128x128xbf16, #tpu.memory_space<vmem>>, vector<128x128xbf16>
    %c0_10 = arith.constant 0 : index
    %c0_11 = arith.constant 0 : index
    %10 = vector.load %arg9[%c0_10, %c0_11] : memref<128x128xbf16, #tpu.memory_space<vmem>>, vector<128x128xbf16>
    %cst_12 = arith.constant dense<0.000000e+00> : vector<128x128xf32>
    %11 = tpu.matmul %9, %10, %cst_12 {dimension_numbers = #tpu.dot_dimension_numbers<[1], [0], [0], [1], [0, 0, 1, 1], [], []>} : vector<128x128xbf16>, vector<128x128xbf16>, vector<128x128xf32> -> vector<128x128xf32>
    %c0_13 = arith.constant 0 : index
    %c0_14 = arith.constant 0 : index
    %12 = vector.load %arg10[%c0_13, %c0_14] : memref<1x128xf32, #tpu.memory_space<vmem>>, vector<1x128xf32>
    %13 = vector.broadcast %12 : vector<1x128xf32> to vector<128x128xf32>
    %14 = arith.addf %11, %13 : vector<128x128xf32>
    %15 = arith.addf %8, %14 : vector<128x128xf32>
    %cst_15 = arith.constant 0.000000e+00 : f32
    %16 = vector.broadcast %cst_15 : f32 to vector<128x128xf32>
    %17 = arith.maximumf %15, %16 : vector<128x128xf32>
    %c0_16 = arith.constant 0 : index
    %c0_17 = arith.constant 0 : index
    %18 = vector.load %arg4[%c0_16, %c0_17] : memref<128x128xbf16, #tpu.memory_space<vmem>>, vector<128x128xbf16>
    %c0_18 = arith.constant 0 : index
    %c0_19 = arith.constant 0 : index
    %19 = vector.load %arg11[%c0_18, %c0_19] : memref<128x128xbf16, #tpu.memory_space<vmem>>, vector<128x128xbf16>
    %c0_20 = arith.constant 0 : index
    %c0_21 = arith.constant 0 : index
    %20 = vector.load %arg12[%c0_20, %c0_21] : memref<1x128xf32, #tpu.memory_space<vmem>>, vector<1x128xf32>
    %21 = arith.truncf %17 : vector<128x128xf32> to vector<128x128xbf16>
    %cst_22 = arith.constant dense<0.000000e+00> : vector<128x128xf32>
    %22 = tpu.matmul %18, %21, %cst_22 {dimension_numbers = #tpu.dot_dimension_numbers<[1], [0], [0], [1], [0, 0, 1, 1], [], []>} : vector<128x128xbf16>, vector<128x128xbf16>, vector<128x128xf32> -> vector<128x128xf32>
    %23 = arith.truncf %22 : vector<128x128xf32> to vector<128x128xbf16>
    %cst_23 = arith.constant dense<0.000000e+00> : vector<128x128xf32>
    %24 = tpu.matmul %23, %19, %cst_23 {dimension_numbers = #tpu.dot_dimension_numbers<[1], [0], [0], [1], [0, 0, 1, 1], [], []>} : vector<128x128xbf16>, vector<128x128xbf16>, vector<128x128xf32> -> vector<128x128xf32>
    %25 = vector.broadcast %20 : vector<1x128xf32> to vector<128x128xf32>
    %26 = arith.addf %24, %25 : vector<128x128xf32>
    %27 = arith.addf %26, %15 : vector<128x128xf32>
    %cst_24 = arith.constant 0.000000e+00 : f32
    %28 = vector.broadcast %cst_24 : f32 to vector<128x128xf32>
    %29 = arith.maximumf %27, %28 : vector<128x128xf32>
    %30 = arith.truncf %29 : vector<128x128xf32> to vector<128x128xbf16>
    %cst_25 = arith.constant dense<0.000000e+00> : vector<128x128xf32>
    %31 = tpu.matmul %18, %30, %cst_25 {dimension_numbers = #tpu.dot_dimension_numbers<[1], [0], [0], [1], [0, 0, 1, 1], [], []>} : vector<128x128xbf16>, vector<128x128xbf16>, vector<128x128xf32> -> vector<128x128xf32>
    %32 = arith.truncf %31 : vector<128x128xf32> to vector<128x128xbf16>
    %cst_26 = arith.constant dense<0.000000e+00> : vector<128x128xf32>
    %33 = tpu.matmul %32, %19, %cst_26 {dimension_numbers = #tpu.dot_dimension_numbers<[1], [0], [0], [1], [0, 0, 1, 1], [], []>} : vector<128x128xbf16>, vector<128x128xbf16>, vector<128x128xf32> -> vector<128x128xf32>
    %34 = vector.broadcast %20 : vector<1x128xf32> to vector<128x128xf32>
    %35 = arith.addf %33, %34 : vector<128x128xf32>
    %36 = arith.addf %35, %15 : vector<128x128xf32>
    %cst_27 = arith.constant 0.000000e+00 : f32
    %37 = vector.broadcast %cst_27 : f32 to vector<128x128xf32>
    %38 = arith.maximumf %36, %37 : vector<128x128xf32>
    %39 = arith.truncf %38 : vector<128x128xf32> to vector<128x128xbf16>
    %cst_28 = arith.constant dense<0.000000e+00> : vector<128x128xf32>
    %40 = tpu.matmul %18, %39, %cst_28 {dimension_numbers = #tpu.dot_dimension_numbers<[1], [0], [0], [1], [0, 0, 1, 1], [], []>} : vector<128x128xbf16>, vector<128x128xbf16>, vector<128x128xf32> -> vector<128x128xf32>
    %41 = arith.truncf %40 : vector<128x128xf32> to vector<128x128xbf16>
    %cst_29 = arith.constant dense<0.000000e+00> : vector<128x128xf32>
    %42 = tpu.matmul %41, %19, %cst_29 {dimension_numbers = #tpu.dot_dimension_numbers<[1], [0], [0], [1], [0, 0, 1, 1], [], []>} : vector<128x128xbf16>, vector<128x128xbf16>, vector<128x128xf32> -> vector<128x128xf32>
    %43 = vector.broadcast %20 : vector<1x128xf32> to vector<128x128xf32>
    %44 = arith.addf %42, %43 : vector<128x128xf32>
    %45 = arith.addf %44, %15 : vector<128x128xf32>
    %cst_30 = arith.constant 0.000000e+00 : f32
    %46 = vector.broadcast %cst_30 : f32 to vector<128x128xf32>
    %47 = arith.maximumf %45, %46 : vector<128x128xf32>
    %c0_31 = arith.constant 0 : index
    %c0_32 = arith.constant 0 : index
    %48 = vector.load %arg5[%c0_31, %c0_32] : memref<128x128xbf16, #tpu.memory_space<vmem>>, vector<128x128xbf16>
    %49 = arith.truncf %47 : vector<128x128xf32> to vector<128x128xbf16>
    %cst_33 = arith.constant dense<0.000000e+00> : vector<128x128xf32>
    %50 = tpu.matmul %48, %49, %cst_33 {dimension_numbers = #tpu.dot_dimension_numbers<[1], [0], [0], [1], [0, 0, 1, 1], [], []>} : vector<128x128xbf16>, vector<128x128xbf16>, vector<128x128xf32> -> vector<128x128xf32>
    %cst_34 = arith.constant 0.000000e+00 : f32
    %51 = vector.broadcast %cst_34 : f32 to vector<128x128xf32>
    %52 = arith.maximumf %50, %51 : vector<128x128xf32>
    %53 = arith.truncf %52 : vector<128x128xf32> to vector<128x128xbf16>
    %c0_35 = arith.constant 0 : index
    %c0_36 = arith.constant 0 : index
    %54 = vector.load %arg13[%c0_35, %c0_36] : memref<128x128xbf16, #tpu.memory_space<vmem>>, vector<128x128xbf16>
    %cst_37 = arith.constant dense<0.000000e+00> : vector<128x128xf32>
    %55 = tpu.matmul %53, %54, %cst_37 {dimension_numbers = #tpu.dot_dimension_numbers<[1], [0], [0], [1], [0, 0, 1, 1], [], []>} : vector<128x128xbf16>, vector<128x128xbf16>, vector<128x128xf32> -> vector<128x128xf32>
    %c0_38 = arith.constant 0 : index
    %c0_39 = arith.constant 0 : index
    %56 = vector.load %arg14[%c0_38, %c0_39] : memref<1x128xf32, #tpu.memory_space<vmem>>, vector<1x128xf32>
    %57 = vector.broadcast %56 : vector<1x128xf32> to vector<128x128xf32>
    %58 = arith.addf %55, %57 : vector<128x128xf32>
    %cst_40 = arith.constant 0.000000e+00 : f32
    %59 = vector.broadcast %cst_40 : f32 to vector<128x128xf32>
    %60 = arith.maximumf %58, %59 : vector<128x128xf32>
    %c0_41 = arith.constant 0 : index
    %c0_42 = arith.constant 0 : index
    %61 = vector.load %arg6[%c0_41, %c0_42] : memref<8x128xbf16, #tpu.memory_space<vmem>>, vector<8x128xbf16>
    %62 = arith.truncf %60 : vector<128x128xf32> to vector<128x128xbf16>
    %cst_43 = arith.constant dense<0.000000e+00> : vector<8x128xf32>
    %63 = tpu.matmul %61, %62, %cst_43 {dimension_numbers = #tpu.dot_dimension_numbers<[1], [0], [0], [1], [0, 0, 1, 1], [], []>} : vector<8x128xbf16>, vector<128x128xbf16>, vector<8x128xf32> -> vector<8x128xf32>
    %cst_44 = arith.constant 0.000000e+00 : f32
    %64 = vector.broadcast %cst_44 : f32 to vector<8x128xf32>
    %65 = arith.maximumf %63, %64 : vector<8x128xf32>
    %c0_45 = arith.constant 0 : index
    %c0_46 = arith.constant 0 : index
    %66 = vector.load %arg15[%c0_45, %c0_46] : memref<8x128xf32, #tpu.memory_space<vmem>>, vector<8x128xf32>
    tpu.vector_store %arg15[%c0_45, %c0_46], %65 {strides = array<i32>} : memref<8x128xf32, #tpu.memory_space<vmem>>, vector<8x128xf32>,
    return
  }
  func.func @transform_0(%arg0: i32) -> (i32, i32) {
    %c0_i32 = arith.constant 0 : i32
    %c0_i32_0 = arith.constant 0 : i32
    %c0_i32_1 = arith.constant 0 : i32
    return %c0_i32, %c0_i32_0 : i32, i32
  }
  func.func @transform_1(%arg0: i32) -> (i32, i32) {
    %c0_i32 = arith.constant 0 : i32
    %c0_i32_0 = arith.constant 0 : i32
    %c0_i32_1 = arith.constant 0 : i32
    return %c0_i32, %c0_i32_0 : i32, i32
  }
  func.func @transform_2(%arg0: i32) -> (i32, i32) {
    %c0_i32 = arith.constant 0 : i32
    %c0_i32_0 = arith.constant 0 : i32
    %c0_i32_1 = arith.constant 0 : i32
    return %c0_i32, %c0_i32_0 : i32, i32
  }
  func.func @transform_3(%arg0: i32) -> (i32, i32) {
    %c0_i32 = arith.constant 0 : i32
    %c0_i32_0 = arith.constant 0 : i32
    %c0_i32_1 = arith.constant 0 : i32
    return %c0_i32, %c0_i32_0 : i32, i32
  }
  func.func @transform_4(%arg0: i32) -> (i32, i32) {
    %c0_i32 = arith.constant 0 : i32
    %c0_i32_0 = arith.constant 0 : i32
    %c0_i32_1 = arith.constant 0 : i32
    return %c0_i32, %c0_i32_0 : i32, i32
  }
  func.func @transform_5(%arg0: i32) -> (i32, i32) {
    %c0_i32 = arith.constant 0 : i32
    %c0_i32_0 = arith.constant 0 : i32
    %c0_i32_1 = arith.constant 0 : i32
    return %c0_i32, %c0_i32_0 : i32, i32
  }
  func.func @transform_6(%arg0: i32) -> (i32, i32) {
    %c0_i32 = arith.constant 0 : i32
    %c0_i32_0 = arith.constant 0 : i32
    %c0_i32_1 = arith.constant 0 : i32
    return %c0_i32, %c0_i32_0 : i32, i32
  }
  func.func @transform_7(%arg0: i32) -> (i32, i32) {
    %c0_i32 = arith.constant 0 : i32
    %c0_i32_0 = arith.constant 0 : i32
    %c0_i32_1 = arith.constant 0 : i32
    return %c0_i32, %c0_i32_0 : i32, i32
  }
  func.func @transform_8(%arg0: i32) -> (i32, i32) {
    %c0_i32 = arith.constant 0 : i32
    %c0_i32_0 = arith.constant 0 : i32
    %c0_i32_1 = arith.constant 0 : i32
    return %c0_i32, %c0_i32_0 : i32, i32
  }
  func.func @transform_9(%arg0: i32) -> (i32, i32) {
    %c0_i32 = arith.constant 0 : i32
    %c0_i32_0 = arith.constant 0 : i32
    %c0_i32_1 = arith.constant 0 : i32
    return %c0_i32, %c0_i32_0 : i32, i32
  }
  func.func @transform_10(%arg0: i32) -> (i32, i32) {
    %c0_i32 = arith.constant 0 : i32
    %c0_i32_0 = arith.constant 0 : i32
    %c0_i32_1 = arith.constant 0 : i32
    return %c0_i32, %c0_i32_0 : i32, i32
  }
  func.func @transform_11(%arg0: i32) -> (i32, i32) {
    %c0_i32 = arith.constant 0 : i32
    %c0_i32_0 = arith.constant 0 : i32
    %c0_i32_1 = arith.constant 0 : i32
    return %c0_i32, %c0_i32_0 : i32, i32
  }
  func.func @transform_12(%arg0: i32) -> (i32, i32) {
    %c0_i32 = arith.constant 0 : i32
    %c0_i32_0 = arith.constant 0 : i32
    %c0_i32_1 = arith.constant 0 : i32
    return %c0_i32, %c0_i32_0 : i32, i32
  }
  func.func @transform_13(%arg0: i32) -> (i32, i32) {
    %c0_i32 = arith.constant 0 : i32
    %c0_i32_0 = arith.constant 0 : i32
    %c0_i32_1 = arith.constant 0 : i32
    return %c0_i32, %c0_i32_0 : i32, i32
  }
  func.func @transform_14(%arg0: i32) -> (i32, i32) {
    %c0_i32 = arith.constant 0 : i32
    %c0_i32_0 = arith.constant 0 : i32
    %c0_i32_1 = arith.constant 0 : i32
    return %c0_i32, %c0_i32_0 : i32, i32
  }
}

</mosaic_0001>

<llo_original>
// kernel: embed_loopy_bp_forward.1
$region0: #{embed_loopy_bp_forward.1}
  #allocation0 [shape = 'u32[]', space=smem, size = 0x4, offset = 0x4, fixed_abs, tag = 'smem constant byte address 0x4 - core index']
  #allocation1 [shape = 'u32[144,128]{1,0:T(1,128)}', space=vmem, size = 0x12000, scoped, tag = 'internal scratch']
  %s0 = inlined_call_operand.vmem [shape: bf16[128,128], index: 0, kind: input, shape index: {}]
  %s1 = inlined_call_operand.vmem [shape: bf16[128,128], index: 1, kind: input, shape index: {}]
  %s2 = inlined_call_operand.vmem [shape: bf16[128,128], index: 2, kind: input, shape index: {}]
  %s3 = inlined_call_operand.vmem [shape: bf16[128,128], index: 3, kind: input, shape index: {}]
  %s4 = inlined_call_operand.vmem [shape: bf16[128,128], index: 4, kind: input, shape index: {}]
  %s5 = inlined_call_operand.vmem [shape: bf16[8,128], index: 5, kind: input, shape index: {}]
  %s6 = inlined_call_operand.vmem [shape: bf16[128,128], index: 6, kind: input, shape index: {}]
  %s7 = inlined_call_operand.vmem [shape: f32[1,128], index: 7, kind: input, shape index: {}]
  %s8 = inlined_call_operand.vmem [shape: bf16[128,128], index: 8, kind: input, shape index: {}]
  %s9 = inlined_call_operand.vmem [shape: f32[1,128], index: 9, kind: input, shape index: {}]
  %s10 = inlined_call_operand.vmem [shape: bf16[128,128], index: 10, kind: input, shape index: {}]
  %s11 = inlined_call_operand.vmem [shape: f32[1,128], index: 11, kind: input, shape index: {}]
  %s12 = inlined_call_operand.vmem [shape: bf16[128,128], index: 12, kind: input, shape index: {}]
  %s13 = inlined_call_operand.vmem [shape: f32[1,128], index: 13, kind: input, shape index: {}]
  %s14 = inlined_call_operand.vmem [shape: f32[8,128], index: 14, kind: output, shape index: {}]
  %s15 = sld [smem:[#allocation0]]
  $region66: #{embed_loopy_bp_forward.1} parent=0
    _
  %s17 = ssub.s32 1, %s15
  %s18 = scalar_select 0, %s17, %s15
  // Predicated region
  $region2: #{embed_loopy_bp_forward.1} parent=0 // pred_check
    _
  $region3: #{embed_loopy_bp_forward.1} parent=0 // pred_check_branch
    %20 = sbr.rel (0) target = $region5
  $region4: #{embed_loopy_bp_forward.1} parent=0 // pred_region
    _
  $region5: #{embed_loopy_bp_forward.1} parent=0 // pred_fallthru
    _
  // Predicated region
  $region6: #{embed_loopy_bp_forward.1} parent=0 // pred_check
    _
  $region7: #{embed_loopy_bp_forward.1} parent=0 // pred_check_branch
    %22 = sbr.rel (0) target = $region9
  $region8: #{embed_loopy_bp_forward.1} parent=0 // pred_region
    _
  $region9: #{embed_loopy_bp_forward.1} parent=0 // pred_fallthru
    _
  // Predicated region
  $region10: #{embed_loopy_bp_forward.1} parent=0 // pred_check
    _
  $region11: #{embed_loopy_bp_forward.1} parent=0 // pred_check_branch
    %24 = sbr.rel (0) target = $region13
  $region12: #{embed_loopy_bp_forward.1} parent=0 // pred_region
    _
  $region13: #{embed_loopy_bp_forward.1} parent=0 // pred_fallthru
    _
  // Predicated region
  $region14: #{embed_loopy_bp_forward.1} parent=0 // pred_check
    _
  $region15: #{embed_loopy_bp_forward.1} parent=0 // pred_check_branch
    %26 = sbr.rel (0) target = $region17
  $region16: #{embed_loopy_bp_forward.1} parent=0 // pred_region
    _
  $region17: #{embed_loopy_bp_forward.1} parent=0 // pred_fallthru
    _
  // Predicated region
  $region18: #{embed_loopy_bp_forward.1} parent=0 // pred_check
    _
  $region19: #{embed_loopy_bp_forward.1} parent=0 // pred_check_branch
    %28 = sbr.rel (0) target = $region21
  $region20: #{embed_loopy_bp_forward.1} parent=0 // pred_region
    _
  $region21: #{embed_loopy_bp_forward.1} parent=0 // pred_fallthru
    _
  // Predicated region
  $region22: #{embed_loopy_bp_forward.1} parent=0 // pred_check
    _
  $region23: #{embed_loopy_bp_forward.1} parent=0 // pred_check_branch
    %30 = sbr.rel (0) target = $region25
  $region24: #{embed_loopy_bp_forward.1} parent=0 // pred_region
    _
  $region25: #{embed_loopy_bp_forward.1} parent=0 // pred_fallthru
    _
  // Predicated region
  $region26: #{embed_loopy_bp_forward.1} parent=0 // pred_check
    _
  $region27: #{embed_loopy_bp_forward.1} parent=0 // pred_check_branch
    %32 = sbr.rel (0) target = $region29
  $region28: #{embed_loopy_bp_forward.1} parent=0 // pred_region
    _
  $region29: #{embed_loopy_bp_forward.1} parent=0 // pred_fallthru
    _
  // Predicated region
  $region30: #{embed_loopy_bp_forward.1} parent=0 // pred_check
    _
  $region31: #{embed_loopy_bp_forward.1} parent=0 // pred_check_branch
    %34 = sbr.rel (0) target = $region33
  $region32: #{embed_loopy_bp_forward.1} parent=0 // pred_region
    _
  $region33: #{embed_loopy_bp_forward.1} parent=0 // pred_fallthru
    _
  // Predicated region
  $region34: #{embed_loopy_bp_forward.1} parent=0 // pred_check
    _
  $region35: #{embed_loopy_bp_forward.1} parent=0 // pred_check_branch
    %36 = sbr.rel (0) target = $region37
  $region36: #{embed_loopy_bp_forward.1} parent=0 // pred_region
    _
  $region37: #{embed_loopy_bp_forward.1} parent=0 // pred_fallthru
    _
  // Predicated region
  $region38: #{embed_loopy_bp_forward.1} parent=0 // pred_check
    _
  $region39: #{embed_loopy_bp_forward.1} parent=0 // pred_check_branch
    %38 = sbr.rel (0) target = $region41
  $region40: #{embed_loopy_bp_forward.1} parent=0 // pred_region
    _
  $region41: #{embed_loopy_bp_forward.1} parent=0 // pred_fallthru
    _
  // Predicated region
  $region42: #{embed_loopy_bp_forward.1} parent=0 // pred_check
    _
  $region43: #{embed_loopy_bp_forward.1} parent=0 // pred_check_branch
    %40 = sbr.rel (0) target = $region45
  $region44: #{embed_loopy_bp_forward.1} parent=0 // pred_region
    _
  $region45: #{embed_loopy_bp_forward.1} parent=0 // pred_fallthru
    _
  // Predicated region
  $region46: #{embed_loopy_bp_forward.1} parent=0 // pred_check
    _
  $region47: #{embed_loopy_bp_forward.1} parent=0 // pred_check_branch
    %42 = sbr.rel (0) target = $region49
  $region48: #{embed_loopy_bp_forward.1} parent=0 // pred_region
    _
  $region49: #{embed_loopy_bp_forward.1} parent=0 // pred_fallthru
    _
  // Predicated region
  $region50: #{embed_loopy_bp_forward.1} parent=0 // pred_check
    _
  $region51: #{embed_loopy_bp_forward.1} parent=0 // pred_check_branch
    %44 = sbr.rel (0) target = $region53
  $region52: #{embed_loopy_bp_forward.1} parent=0 // pred_region
    _
  $region53: #{embed_loopy_bp_forward.1} parent=0 // pred_fallthru
    _
  // Predicated region
  $region54: #{embed_loopy_bp_forward.1} parent=0 // pred_check
    _
  $region55: #{embed_loopy_bp_forward.1} parent=0 // pred_check_branch
    %46 = sbr.rel (0) target = $region57
  $region56: #{embed_loopy_bp_forward.1} parent=0 // pred_region
    _
  $region57: #{embed_loopy_bp_forward.1} parent=0 // pred_fallthru
    _
  %v48 = vld [vmem:[%s0] sm:$0xf]
  %v49 = vld [vmem:[%s0 + $0x4] sm:$0xf]
  %v50 = vld [vmem:[%s0 + $0x8] sm:$0xf]
  %v51 = vld [vmem:[%s0 + $0xc] sm:$0xf]
  %v52 = vld [vmem:[%s0 + $0x10] sm:$0xf]
  %v53 = vld [vmem:[%s0 + $0x14] sm:$0xf]
  %v54 = vld [vmem:[%s0 + $0x18] sm:$0xf]
  %v55 = vld [vmem:[%s0 + $0x1c] sm:$0xf]
  %v56 = vld [vmem:[%s0 + $0x20] sm:$0xf]
  %v57 = vld [vmem:[%s0 + $0x24] sm:$0xf]
  %v58 = vld [vmem:[%s0 + $0x28] sm:$0xf]
  %v59 = vld [vmem:[%s0 + $0x2c] sm:$0xf]
  %v60 = vld [vmem:[%s0 + $0x30] sm:$0xf]
  %v61 = vld [vmem:[%s0 + $0x34] sm:$0xf]
  %v62 = vld [vmem:[%s0 + $0x38] sm:$0xf]
  %v63 = vld [vmem:[%s0 + $0x3c] sm:$0xf]
  %v64 = vld [vmem:[%s6] sm:$0xf]
  %v65 = vld [vmem:[%s6 + $0x4] sm:$0xf]
  %v66 = vld [vmem:[%s6 + $0x8] sm:$0xf]
  %v67 = vld [vmem:[%s6 + $0xc] sm:$0xf]
  %v68 = vld [vmem:[%s6 + $0x10] sm:$0xf]
  %v69 = vld [vmem:[%s6 + $0x14] sm:$0xf]
  %v70 = vld [vmem:[%s6 + $0x18] sm:$0xf]
  %v71 = vld [vmem:[%s6 + $0x1c] sm:$0xf]
  %v72 = vld [vmem:[%s6 + $0x20] sm:$0xf]
  %v73 = vld [vmem:[%s6 + $0x24] sm:$0xf]
  %v74 = vld [vmem:[%s6 + $0x28] sm:$0xf]
  %v75 = vld [vmem:[%s6 + $0x2c] sm:$0xf]
  %v76 = vld [vmem:[%s6 + $0x30] sm:$0xf]
  %v77 = vld [vmem:[%s6 + $0x34] sm:$0xf]
  %v78 = vld [vmem:[%s6 + $0x38] sm:$0xf]
  %v79 = vld [vmem:[%s6 + $0x3c] sm:$0xf]
  %v80 = vld [vmem:[%s7] sm:$0x1]
  %v82 = vlaneseq
  %v83 = vshrl.u32 %v82, 7
  %v84 = vsub.s32 0, %v83
  %v85 = vrot.slane %v80, %v84
  %v103 = vunpack.c.l.b16 %v48
  %v104 = vunpack.c.l.b16 %v49
  %v105 = vunpack.c.l.b16 %v50
  %v106 = vunpack.c.l.b16 %v51
  %v107 = vunpack.c.l.b16 %v52
  %v108 = vunpack.c.l.b16 %v53
  %v109 = vunpack.c.l.b16 %v54
  %v110 = vunpack.c.l.b16 %v55
  %v111 = vunpack.c.l.b16 %v56
  %v112 = vunpack.c.l.b16 %v57
  %v113 = vunpack.c.l.b16 %v58
  %v114 = vunpack.c.l.b16 %v59
  %v115 = vunpack.c.l.b16 %v60
  %v116 = vunpack.c.l.b16 %v61
  %v117 = vunpack.c.l.b16 %v62
  %v118 = vunpack.c.l.b16 %v63
  %v119 = vpack.c.b16 %v104, %v103
  %v120 = vpack.c.b16 %v106, %v105
  %v121 = vpack.c.b16 %v108, %v107
  %v122 = vpack.c.b16 %v110, %v109
  %v123 = vpack.c.b16 %v112, %v111
  %v124 = vpack.c.b16 %v114, %v113
  %v125 = vpack.c.b16 %v116, %v115
  %v126 = vpack.c.b16 %v118, %v117
  %v151 = vunpack.c.l.b16 %v64
  %v152 = vunpack.c.l.b16 %v65
  %v153 = vunpack.c.l.b16 %v66
  %v154 = vunpack.c.l.b16 %v67
  %v155 = vunpack.c.l.b16 %v68
  %v156 = vunpack.c.l.b16 %v69
  %v157 = vunpack.c.l.b16 %v70
  %v158 = vunpack.c.l.b16 %v71
  %v159 = vunpack.c.l.b16 %v72
  %v160 = vunpack.c.l.b16 %v73
  %v161 = vunpack.c.l.b16 %v74
  %v162 = vunpack.c.l.b16 %v75
  %v163 = vunpack.c.l.b16 %v76
  %v164 = vunpack.c.l.b16 %v77
  %v165 = vunpack.c.l.b16 %v78
  %v166 = vunpack.c.l.b16 %v79
  %v167 = vpack.c.b16 %v152, %v151
  %v168 = vpack.c.b16 %v154, %v153
  %v169 = vpack.c.b16 %v156, %v155
  %v170 = vpack.c.b16 %v158, %v157
  %v171 = vpack.c.b16 %v160, %v159
  %v172 = vpack.c.b16 %v162, %v161
  %v173 = vpack.c.b16 %v164, %v163
  %v174 = vpack.c.b16 %v166, %v165
  %183 = vmatprep.subr.bf16.mxu0 0
  %184 = vmatpush1.bf16.msra.mxu0 %v174
  %185 = vmatprep.subr.bf16.mxu0 0
  %186 = vmatpush1.bf16.msra.mxu0 %v173
  %187 = vmatprep.subr.bf16.mxu0 0
  %188 = vmatpush1.bf16.msra.mxu0 %v172
  %189 = vmatprep.subr.bf16.mxu0 0
  %190 = vmatpush1.bf16.msra.mxu0 %v171
  %191 = vmatprep.subr.bf16.mxu0 0
  %192 = vmatpush1.bf16.msra.mxu0 %v170
  %193 = vmatprep.subr.bf16.mxu0 0
  %194 = vmatpush1.bf16.msra.mxu0 %v169
  %195 = vmatprep.subr.bf16.mxu0 0
  %196 = vmatpush1.bf16.msra.mxu0 %v168
  %197 = vmatprep.subr.bf16.mxu0 0
  %198 = vmatpush1.bf16.msra.mxu0 %v167
  %199 = vmatprep.subr.bf16.mxu0 0
  %200 = vmatpush2.bf16.msra.mxu0 0
  %201 = vmatprep.subr.bf16.mxu0 0
  %202 = vmatpush2.bf16.msra.mxu0 0
  %203 = vmatprep.subr.bf16.mxu0 0
  %204 = vmatpush2.bf16.msra.mxu0 0
  %205 = vmatprep.subr.bf16.mxu0 0
  %206 = vmatpush2.bf16.msra.mxu0 0
  %207 = vmatprep.subr.bf16.mxu0 0
  %208 = vmatpush2.bf16.msra.mxu0 0
  %209 = vmatprep.subr.bf16.mxu0 0
  %210 = vmatpush2.bf16.msra.mxu0 0
  %211 = vmatprep.subr.bf16.mxu0 0
  %212 = vmatpush2.bf16.msra.mxu0 0
  %213 = vmatprep.subr.bf16.mxu0 0
  %214 = vmatpush2.bf16.msra.mxu0 0
  %215 = vmatprep.mubr.bf16.mxu0 0
  %216 = vmatmul.mubr.bf16.gmra.mxu0 %v119
  %v217 = vpop.f32.mrf.mxu0
  %v218 = vadd.f32 %v85, %v217
  %v219 = vpop.f32.mrf.mxu0
  %v220 = vpop.f32.mrf.mxu0
  %v221 = vadd.f32 %v85, %v220
  %v222 = vpop.f32.mrf.mxu0
  %223 = vmatprep.mubr.bf16.mxu0 0
  %224 = vmatmul.mubr.bf16.gmra.mxu0 %v120
  %v225 = vpop.f32.mrf.mxu0
  %v226 = vadd.f32 %v85, %v225
  %v227 = vpop.f32.mrf.mxu0
  %v228 = vpop.f32.mrf.mxu0
  %v229 = vadd.f32 %v85, %v228
  %v230 = vpop.f32.mrf.mxu0
  %231 = vmatprep.mubr.bf16.mxu0 0
  %232 = vmatmul.mubr.bf16.gmra.mxu0 %v121
  %v233 = vpop.f32.mrf.mxu0
  %v234 = vadd.f32 %v85, %v233
  %v235 = vpop.f32.mrf.mxu0
  %v236 = vpop.f32.mrf.mxu0
  %v237 = vadd.f32 %v85, %v236
  %v238 = vpop.f32.mrf.mxu0
  %239 = vmatprep.mubr.bf16.mxu0 0
  %240 = vmatmul.mubr.bf16.gmra.mxu0 %v122
  %v241 = vpop.f32.mrf.mxu0
  %v242 = vadd.f32 %v85, %v241
  %v243 = vpop.f32.mrf.mxu0
  %v244 = vpop.f32.mrf.mxu0
  %v245 = vadd.f32 %v85, %v244
  %v246 = vpop.f32.mrf.mxu0
  %247 = vmatprep.mubr.bf16.mxu0 0
  %248 = vmatmul.mubr.bf16.gmra.mxu0 %v123
  %v249 = vpop.f32.mrf.mxu0
  %v250 = vadd.f32 %v85, %v249
  %v251 = vpop.f32.mrf.mxu0
  %v252 = vpop.f32.mrf.mxu0
  %v253 = vadd.f32 %v85, %v252
  %v254 = vpop.f32.mrf.mxu0
  %255 = vmatprep.mubr.bf16.mxu0 0
  %256 = vmatmul.mubr.bf16.gmra.mxu0 %v124
  %v257 = vpop.f32.mrf.mxu0
  %v258 = vadd.f32 %v85, %v257
  %v259 = vpop.f32.mrf.mxu0
  %v260 = vpop.f32.mrf.mxu0
  %v261 = vadd.f32 %v85, %v260
  %v262 = vpop.f32.mrf.mxu0
  %263 = vmatprep.mubr.bf16.mxu0 0
  %264 = vmatmul.mubr.bf16.gmra.mxu0 %v125
  %v265 = vpop.f32.mrf.mxu0
  %v266 = vadd.f32 %v85, %v265
  %v267 = vpop.f32.mrf.mxu0
  %v268 = vpop.f32.mrf.mxu0
  %v269 = vadd.f32 %v85, %v268
  %v270 = vpop.f32.mrf.mxu0
  %271 = vmatprep.mubr.bf16.mxu0 0
  %272 = vmatmul.mubr.bf16.gmra.mxu0 %v126
  %v273 = vpop.f32.mrf.mxu0
  %v274 = vadd.f32 %v85, %v273
  %v275 = vpop.f32.mrf.mxu0
  %v276 = vpop.f32.mrf.mxu0
  %v277 = vadd.f32 %v85, %v276
  %v278 = vpop.f32.mrf.mxu0
  %279 = vdwg.mxu0
  %v280 = vld [vmem:[%s2] sm:$0xf]
  %v281 = vld [vmem:[%s2 + $0x4] sm:$0xf]
  %v282 = vld [vmem:[%s2 + $0x8] sm:$0xf]
  %v283 = vld [vmem:[%s2 + $0xc] sm:$0xf]
  %v284 = vld [vmem:[%s2 + $0x10] sm:$0xf]
  %v285 = vld [vmem:[%s2 + $0x14] sm:$0xf]
  %v286 = vld [vmem:[%s2 + $0x18] sm:$0xf]
  %v287 = vld [vmem:[%s2 + $0x1c] sm:$0xf]
  %v288 = vld [vmem:[%s2 + $0x20] sm:$0xf]
  %v289 = vld [vmem:[%s2 + $0x24] sm:$0xf]
  %v290 = vld [vmem:[%s2 + $0x28] sm:$0xf]
  %v291 = vld [vmem:[%s2 + $0x2c] sm:$0xf]
  %v292 = vld [vmem:[%s2 + $0x30] sm:$0xf]
  %v293 = vld [vmem:[%s2 + $0x34] sm:$0xf]
  %v294 = vld [vmem:[%s2 + $0x38] sm:$0xf]
  %v295 = vld [vmem:[%s2 + $0x3c] sm:$0xf]
  %v296 = vpack.c.bf16 %v221, %v218
  %v297 = vpack.c.bf16 %v229, %v226
  %v298 = vpack.c.bf16 %v237, %v234
  %v299 = vpack.c.bf16 %v245, %v242
  %v300 = vpack.c.bf16 %v253, %v250
  %v301 = vpack.c.bf16 %v261, %v258
  %v302 = vpack.c.bf16 %v269, %v266
  %v303 = vpack.c.bf16 %v277, %v274
  %v304 = vld [vmem:[%s1] sm:$0xf]
  %v305 = vld [vmem:[%s1 + $0x4] sm:$0xf]
  %v306 = vld [vmem:[%s1 + $0x8] sm:$0xf]
  %v307 = vld [vmem:[%s1 + $0xc] sm:$0xf]
  %v308 = vld [vmem:[%s1 + $0x10] sm:$0xf]
  %v309 = vld [vmem:[%s1 + $0x14] sm:$0xf]
  %v310 = vld [vmem:[%s1 + $0x18] sm:$0xf]
  %v311 = vld [vmem:[%s1 + $0x1c] sm:$0xf]
  %v312 = vld [vmem:[%s1 + $0x20] sm:$0xf]
  %v313 = vld [vmem:[%s1 + $0x24] sm:$0xf]
  %v314 = vld [vmem:[%s1 + $0x28] sm:$0xf]
  %v315 = vld [vmem:[%s1 + $0x2c] sm:$0xf]
  %v316 = vld [vmem:[%s1 + $0x30] sm:$0xf]
  %v317 = vld [vmem:[%s1 + $0x34] sm:$0xf]
  %v318 = vld [vmem:[%s1 + $0x38] sm:$0xf]
  %v319 = vld [vmem:[%s1 + $0x3c] sm:$0xf]
  %v320 = vld [vmem:[%s8] sm:$0xf]
  %v321 = vld [vmem:[%s8 + $0x4] sm:$0xf]
  %v322 = vld [vmem:[%s8 + $0x8] sm:$0xf]
  %v323 = vld [vmem:[%s8 + $0xc] sm:$0xf]
  %v324 = vld [vmem:[%s8 + $0x10] sm:$0xf]
  %v325 = vld [vmem:[%s8 + $0x14] sm:$0xf]
  %v326 = vld [vmem:[%s8 + $0x18] sm:$0xf]
  %v327 = vld [vmem:[%s8 + $0x1c] sm:$0xf]
  %v328 = vld [vmem:[%s8 + $0x20] sm:$0xf]
  %v329 = vld [vmem:[%s8 + $0x24] sm:$0xf]
  %v330 = vld [vmem:[%s8 + $0x28] sm:$0xf]
  %v331 = vld [vmem:[%s8 + $0x2c] sm:$0xf]
  %v332 = vld [vmem:[%s8 + $0x30] sm:$0xf]
  %v333 = vld [vmem:[%s8 + $0x34] sm:$0xf]
  %v334 = vld [vmem:[%s8 + $0x38] sm:$0xf]
  %v335 = vld [vmem:[%s8 + $0x3c] sm:$0xf]
  %v336 = vld [vmem:[%s9] sm:$0x1]
  %v338 = vlaneseq
  %v339 = vshrl.u32 %v338, 7
  %v340 = vsub.s32 0, %v339
  %v341 = vrot.slane %v336, %v340
  %v359 = vunpack.c.l.b16 %v304
  %v360 = vunpack.c.l.b16 %v305
  %v361 = vunpack.c.l.b16 %v306
  %v362 = vunpack.c.l.b16 %v307
  %v363 = vunpack.c.l.b16 %v308
  %v364 = vunpack.c.l.b16 %v309
  %v365 = vunpack.c.l.b16 %v310
  %v366 = vunpack.c.l.b16 %v311
  %v367 = vunpack.c.l.b16 %v312
  %v368 = vunpack.c.l.b16 %v313
  %v369 = vunpack.c.l.b16 %v314
  %v370 = vunpack.c.l.b16 %v315
  %v371 = vunpack.c.l.b16 %v316
  %v372 = vunpack.c.l.b16 %v317
  %v373 = vunpack.c.l.b16 %v318
  %v374 = vunpack.c.l.b16 %v319
  %v375 = vpack.c.b16 %v360, %v359
  %v376 = vpack.c.b16 %v362, %v361
  %v377 = vpack.c.b16 %v364, %v363
  %v378 = vpack.c.b16 %v366, %v365
  %v379 = vpack.c.b16 %v368, %v367
  %v380 = vpack.c.b16 %v370, %v369
  %v381 = vpack.c.b16 %v372, %v371
  %v382 = vpack.c.b16 %v374, %v373
  %v407 = vunpack.c.l.b16 %v320
  %v408 = vunpack.c.l.b16 %v321
  %v409 = vunpack.c.l.b16 %v322
  %v410 = vunpack.c.l.b16 %v323
  %v411 = vunpack.c.l.b16 %v324
  %v412 = vunpack.c.l.b16 %v325
  %v413 = vunpack.c.l.b16 %v326
  %v414 = vunpack.c.l.b16 %v327
  %v415 = vunpack.c.l.b16 %v328
  %v416 = vunpack.c.l.b16 %v329
  %v417 = vunpack.c.l.b16 %v330
  %v418 = vunpack.c.l.b16 %v331
  %v419 = vunpack.c.l.b16 %v332
  %v420 = vunpack.c.l.b16 %v333
  %v421 = vunpack.c.l.b16 %v334
  %v422 = vunpack.c.l.b16 %v335
  %v423 = vpack.c.b16 %v408, %v407
  %v424 = vpack.c.b16 %v410, %v409
  %v425 = vpack.c.b16 %v412, %v411
  %v426 = vpack.c.b16 %v414, %v413
  %v427 = vpack.c.b16 %v416, %v415
  %v428 = vpack.c.b16 %v418, %v417
  %v429 = vpack.c.b16 %v420, %v419
  %v430 = vpack.c.b16 %v422, %v421
  %439 = vmatprep.subr.bf16.mxu0 0
  %440 = vmatpush1.bf16.msra.mxu0 %v430
  %441 = vmatprep.subr.bf16.mxu0 0
  %442 = vmatpush1.bf16.msra.mxu0 %v429
  %443 = vmatprep.subr.bf16.mxu0 0
  %444 = vmatpush1.bf16.msra.mxu0 %v428
  %445 = vmatprep.subr.bf16.mxu0 0
  %446 = vmatpush1.bf16.msra.mxu0 %v427
  %447 = vmatprep.subr.bf16.mxu0 0
  %448 = vmatpush1.bf16.msra.mxu0 %v426
  %449 = vmatprep.subr.bf16.mxu0 0
  %450 = vmatpush1.bf16.msra.mxu0 %v425
  %451 = vmatprep.subr.bf16.mxu0 0
  %452 = vmatpush1.bf16.msra.mxu0 %v424
  %453 = vmatprep.subr.bf16.mxu0 0
  %454 = vmatpush1.bf16.msra.mxu0 %v423
  %455 = vmatprep.subr.bf16.mxu0 0
  %456 = vmatpush2.bf16.msra.mxu0 0
  %457 = vmatprep.subr.bf16.mxu0 0
  %458 = vmatpush2.bf16.msra.mxu0 0
  %459 = vmatprep.subr.bf16.mxu0 0
  %460 = vmatpush2.bf16.msra.mxu0 0
  %461 = vmatprep.subr.bf16.mxu0 0
  %462 = vmatpush2.bf16.msra.mxu0 0
  %463 = vmatprep.subr.bf16.mxu0 0
  %464 = vmatpush2.bf16.msra.mxu0 0
  %465 = vmatprep.subr.bf16.mxu0 0
  %466 = vmatpush2.bf16.msra.mxu0 0
  %467 = vmatprep.subr.bf16.mxu0 0
  %468 = vmatpush2.bf16.msra.mxu0 0
  %469 = vmatprep.subr.bf16.mxu0 0
  %470 = vmatpush2.bf16.msra.mxu0 0
  %471 = vmatprep.mubr.bf16.mxu0 0
  %472 = vmatmul.mubr.bf16.gmra.mxu0 %v375
  %v473 = vpop.f32.mrf.mxu0
  %v474 = vadd.f32 %v341, %v473
  %v475 = vpop.f32.mrf.mxu0
  %v476 = vpop.f32.mrf.mxu0
  %v477 = vadd.f32 %v341, %v476
  %v478 = vpop.f32.mrf.mxu0
  %479 = vmatprep.mubr.bf16.mxu0 0
  %480 = vmatmul.mubr.bf16.gmra.mxu0 %v376
  %v481 = vpop.f32.mrf.mxu0
  %v482 = vadd.f32 %v341, %v481
  %v483 = vpop.f32.mrf.mxu0
  %v484 = vpop.f32.mrf.mxu0
  %v485 = vadd.f32 %v341, %v484
  %v486 = vpop.f32.mrf.mxu0
  %487 = vmatprep.mubr.bf16.mxu0 0
  %488 = vmatmul.mubr.bf16.gmra.mxu0 %v377
  %v489 = vpop.f32.mrf.mxu0
  %v490 = vadd.f32 %v341, %v489
  %v491 = vpop.f32.mrf.mxu0
  %v492 = vpop.f32.mrf.mxu0
  %v493 = vadd.f32 %v341, %v492
  %v494 = vpop.f32.mrf.mxu0
  %495 = vmatprep.mubr.bf16.mxu0 0
  %496 = vmatmul.mubr.bf16.gmra.mxu0 %v378
  %v497 = vpop.f32.mrf.mxu0
  %v498 = vadd.f32 %v341, %v497
  %v499 = vpop.f32.mrf.mxu0
  %v500 = vpop.f32.mrf.mxu0
  %v501 = vadd.f32 %v341, %v500
  %v502 = vpop.f32.mrf.mxu0
  %503 = vmatprep.mubr.bf16.mxu0 0
  %504 = vmatmul.mubr.bf16.gmra.mxu0 %v379
  %v505 = vpop.f32.mrf.mxu0
  %v506 = vadd.f32 %v341, %v505
  %v507 = vpop.f32.mrf.mxu0
  %v508 = vpop.f32.mrf.mxu0
  %v509 = vadd.f32 %v341, %v508
  %v510 = vpop.f32.mrf.mxu0
  %511 = vmatprep.mubr.bf16.mxu0 0
  %512 = vmatmul.mubr.bf16.gmra.mxu0 %v380
  %v513 = vpop.f32.mrf.mxu0
  %v514 = vadd.f32 %v341, %v513
  %v515 = vpop.f32.mrf.mxu0
  %v516 = vpop.f32.mrf.mxu0
  %v517 = vadd.f32 %v341, %v516
  %v518 = vpop.f32.mrf.mxu0
  %519 = vmatprep.mubr.bf16.mxu0 0
  %520 = vmatmul.mubr.bf16.gmra.mxu0 %v381
  %v521 = vpop.f32.mrf.mxu0
  %v522 = vadd.f32 %v341, %v521
  %v523 = vpop.f32.mrf.mxu0
  %v524 = vpop.f32.mrf.mxu0
  %v525 = vadd.f32 %v341, %v524
  %v526 = vpop.f32.mrf.mxu0
  %527 = vmatprep.mubr.bf16.mxu0 0
  %528 = vmatmul.mubr.bf16.gmra.mxu0 %v382
  %v529 = vpop.f32.mrf.mxu0
  %v530 = vadd.f32 %v341, %v529
  %v531 = vpop.f32.mrf.mxu0
  %v532 = vpop.f32.mrf.mxu0
  %v533 = vadd.f32 %v341, %v532
  %v534 = vpop.f32.mrf.mxu0
  %535 = vdwg.mxu0
  %v552 = vunpack.c.l.b16 %v280
  %v553 = vunpack.c.l.b16 %v281
  %v554 = vunpack.c.l.b16 %v282
  %v555 = vunpack.c.l.b16 %v283
  %v556 = vunpack.c.l.b16 %v284
  %v557 = vunpack.c.l.b16 %v285
  %v558 = vunpack.c.l.b16 %v286
  %v559 = vunpack.c.l.b16 %v287
  %v560 = vunpack.c.l.b16 %v288
  %v561 = vunpack.c.l.b16 %v289
  %v562 = vunpack.c.l.b16 %v290
  %v563 = vunpack.c.l.b16 %v291
  %v564 = vunpack.c.l.b16 %v292
  %v565 = vunpack.c.l.b16 %v293
  %v566 = vunpack.c.l.b16 %v294
  %v567 = vunpack.c.l.b16 %v295
  %v568 = vpack.c.b16 %v553, %v552
  %v569 = vpack.c.b16 %v555, %v554
  %v570 = vpack.c.b16 %v557, %v556
  %v571 = vpack.c.b16 %v559, %v558
  %v572 = vpack.c.b16 %v561, %v560
  %v573 = vpack.c.b16 %v563, %v562
  %v574 = vpack.c.b16 %v565, %v564
  %v575 = vpack.c.b16 %v567, %v566
  %584 = vmatprep.subr.bf16.mxu0 0
  %585 = vmatpush1.bf16.msra.mxu0 %v303
  %586 = vmatprep.subr.bf16.mxu0 0
  %587 = vmatpush1.bf16.msra.mxu0 %v302
  %588 = vmatprep.subr.bf16.mxu0 0
  %589 = vmatpush1.bf16.msra.mxu0 %v301
  %590 = vmatprep.subr.bf16.mxu0 0
  %591 = vmatpush1.bf16.msra.mxu0 %v300
  %592 = vmatprep.subr.bf16.mxu0 0
  %593 = vmatpush1.bf16.msra.mxu0 %v299
  %594 = vmatprep.subr.bf16.mxu0 0
  %595 = vmatpush1.bf16.msra.mxu0 %v298
  %596 = vmatprep.subr.bf16.mxu0 0
  %597 = vmatpush1.bf16.msra.mxu0 %v297
  %598 = vmatprep.subr.bf16.mxu0 0
  %599 = vmatpush1.bf16.msra.mxu0 %v296
  %600 = vmatprep.subr.bf16.mxu0 0
  %601 = vmatpush2.bf16.msra.mxu0 0
  %602 = vmatprep.subr.bf16.mxu0 0
  %603 = vmatpush2.bf16.msra.mxu0 0
  %604 = vmatprep.subr.bf16.mxu0 0
  %605 = vmatpush2.bf16.msra.mxu0 0
  %606 = vmatprep.subr.bf16.mxu0 0
  %607 = vmatpush2.bf16.msra.mxu0 0
  %608 = vmatprep.subr.bf16.mxu0 0
  %609 = vmatpush2.bf16.msra.mxu0 0
  %610 = vmatprep.subr.bf16.mxu0 0
  %611 = vmatpush2.bf16.msra.mxu0 0
  %612 = vmatprep.subr.bf16.mxu0 0
  %613 = vmatpush2.bf16.msra.mxu0 0
  %614 = vmatprep.subr.bf16.mxu0 0
  %615 = vmatpush2.bf16.msra.mxu0 0
  %616 = vmatprep.mubr.bf16.mxu0 0
  %617 = vmatmul.mubr.bf16.gmra.mxu0 %v568
  %v618 = vpop.f32.mrf.mxu0
  %v619 = vadd.f32 %v474, %v618
  %v620 = vpop.f32.mrf.mxu0
  %v621 = vpop.f32.mrf.mxu0
  %v622 = vadd.f32 %v477, %v621
  %v623 = vpop.f32.mrf.mxu0
  %624 = vmatprep.mubr.bf16.mxu0 0
  %625 = vmatmul.mubr.bf16.gmra.mxu0 %v569
  %v626 = vpop.f32.mrf.mxu0
  %v627 = vadd.f32 %v482, %v626
  %v628 = vpop.f32.mrf.mxu0
  %v629 = vpop.f32.mrf.mxu0
  %v630 = vadd.f32 %v485, %v629
  %v631 = vpop.f32.mrf.mxu0
  %632 = vmatprep.mubr.bf16.mxu0 0
  %633 = vmatmul.mubr.bf16.gmra.mxu0 %v570
  %v634 = vpop.f32.mrf.mxu0
  %v635 = vadd.f32 %v490, %v634
  %v636 = vpop.f32.mrf.mxu0
  %v637 = vpop.f32.mrf.mxu0
  %v638 = vadd.f32 %v493, %v637
  %v639 = vpop.f32.mrf.mxu0
  %640 = vmatprep.mubr.bf16.mxu0 0
  %641 = vmatmul.mubr.bf16.gmra.mxu0 %v571
  %v642 = vpop.f32.mrf.mxu0
  %v643 = vadd.f32 %v498, %v642
  %v644 = vpop.f32.mrf.mxu0
  %v645 = vpop.f32.mrf.mxu0
  %v646 = vadd.f32 %v501, %v645
  %v647 = vpop.f32.mrf.mxu0
  %648 = vmatprep.mubr.bf16.mxu0 0
  %649 = vmatmul.mubr.bf16.gmra.mxu0 %v572
  %v650 = vpop.f32.mrf.mxu0
  %v651 = vadd.f32 %v506, %v650
  %v652 = vpop.f32.mrf.mxu0
  %v653 = vpop.f32.mrf.mxu0
  %v654 = vadd.f32 %v509, %v653
  %v655 = vpop.f32.mrf.mxu0
  %656 = vmatprep.mubr.bf16.mxu0 0
  %657 = vmatmul.mubr.bf16.gmra.mxu0 %v573
  %v658 = vpop.f32.mrf.mxu0
  %v659 = vadd.f32 %v514, %v658
  %v660 = vpop.f32.mrf.mxu0
  %v661 = vpop.f32.mrf.mxu0
  %v662 = vadd.f32 %v517, %v661
  %v663 = vpop.f32.mrf.mxu0
  %664 = vmatprep.mubr.bf16.mxu0 0
  %665 = vmatmul.mubr.bf16.gmra.mxu0 %v574
  %v666 = vpop.f32.mrf.mxu0
  %v667 = vadd.f32 %v522, %v666
  %v668 = vpop.f32.mrf.mxu0
  %v669 = vpop.f32.mrf.mxu0
  %v670 = vadd.f32 %v525, %v669
  %v671 = vpop.f32.mrf.mxu0
  %672 = vmatprep.mubr.bf16.mxu0 0
  %673 = vmatmul.mubr.bf16.gmra.mxu0 %v575
  %v674 = vpop.f32.mrf.mxu0
  %v675 = vadd.f32 %v530, %v674
  %v676 = vpop.f32.mrf.mxu0
  %v677 = vpop.f32.mrf.mxu0
  %v678 = vadd.f32 %v533, %v677
  %v679 = vpop.f32.mrf.mxu0
  %680 = vdwg.mxu0
  %v681 = vmax.f32 %v619, 0.0
  %v682 = vmax.f32 %v622, 0.0
  %v683 = vmax.f32 %v627, 0.0
  %v684 = vmax.f32 %v630, 0.0
  %v685 = vmax.f32 %v635, 0.0
  %v686 = vmax.f32 %v638, 0.0
  %v687 = vmax.f32 %v643, 0.0
  %v688 = vmax.f32 %v646, 0.0
  %v689 = vmax.f32 %v651, 0.0
  %v690 = vmax.f32 %v654, 0.0
  %v691 = vmax.f32 %v659, 0.0
  %v692 = vmax.f32 %v662, 0.0
  %v693 = vmax.f32 %v667, 0.0
  %v694 = vmax.f32 %v670, 0.0
  %v695 = vmax.f32 %v675, 0.0
  %v696 = vmax.f32 %v678, 0.0
  %v697 = vld [vmem:[%s3] sm:$0xf]
  %v698 = vld [vmem:[%s3 + $0x4] sm:$0xf]
  %v699 = vld [vmem:[%s3 + $0x8] sm:$0xf]
  %v700 = vld [vmem:[%s3 + $0xc] sm:$0xf]
  %v701 = vld [vmem:[%s3 + $0x10] sm:$0xf]
  %v702 = vld [vmem:[%s3 + $0x14] sm:$0xf]
  %v703 = vld [vmem:[%s3 + $0x18] sm:$0xf]
  %v704 = vld [vmem:[%s3 + $0x1c] sm:$0xf]
  %v705 = vld [vmem:[%s3 + $0x20] sm:$0xf]
  %v706 = vld [vmem:[%s3 + $0x24] sm:$0xf]
  %v707 = vld [vmem:[%s3 + $0x28] sm:$0xf]
  %v708 = vld [vmem:[%s3 + $0x2c] sm:$0xf]
  %v709 = vld [vmem:[%s3 + $0x30] sm:$0xf]
  %v710 = vld [vmem:[%s3 + $0x34] sm:$0xf]
  %v711 = vld [vmem:[%s3 + $0x38] sm:$0xf]
  %v712 = vld [vmem:[%s3 + $0x3c] sm:$0xf]
  %v713 = vld [vmem:[%s10] sm:$0xf]
  %v714 = vld [vmem:[%s10 + $0x4] sm:$0xf]
  %v715 = vld [vmem:[%s10 + $0x8] sm:$0xf]
  %v716 = vld [vmem:[%s10 + $0xc] sm:$0xf]
  %v717 = vld [vmem:[%s10 + $0x10] sm:$0xf]
  %v718 = vld [vmem:[%s10 + $0x14] sm:$0xf]
  %v719 = vld [vmem:[%s10 + $0x18] sm:$0xf]
  %v720 = vld [vmem:[%s10 + $0x1c] sm:$0xf]
  %v721 = vld [vmem:[%s10 + $0x20] sm:$0xf]
  %v722 = vld [vmem:[%s10 + $0x24] sm:$0xf]
  %v723 = vld [vmem:[%s10 + $0x28] sm:$0xf]
  %v724 = vld [vmem:[%s10 + $0x2c] sm:$0xf]
  %v725 = vld [vmem:[%s10 + $0x30] sm:$0xf]
  %v726 = vld [vmem:[%s10 + $0x34] sm:$0xf]
  %v727 = vld [vmem:[%s10 + $0x38] sm:$0xf]
  %v728 = vld [vmem:[%s10 + $0x3c] sm:$0xf]
  %v729 = vld [vmem:[%s11] sm:$0x1]
  %v730 = vpack.c.bf16 %v682, %v681
  %v731 = vpack.c.bf16 %v684, %v683
  %v732 = vpack.c.bf16 %v686, %v685
  %v733 = vpack.c.bf16 %v688, %v687
  %v734 = vpack.c.bf16 %v690, %v689
  %v735 = vpack.c.bf16 %v692, %v691
  %v736 = vpack.c.bf16 %v694, %v693
  %v737 = vpack.c.bf16 %v696, %v695
  %v754 = vunpack.c.l.b16 %v697
  %v755 = vunpack.c.l.b16 %v698
  %v756 = vunpack.c.l.b16 %v699
  %v757 = vunpack.c.l.b16 %v700
  %v758 = vunpack.c.l.b16 %v701
  %v759 = vunpack.c.l.b16 %v702
  %v760 = vunpack.c.l.b16 %v703
  %v761 = vunpack.c.l.b16 %v704
  %v762 = vunpack.c.l.b16 %v705
  %v763 = vunpack.c.l.b16 %v706
  %v764 = vunpack.c.l.b16 %v707
  %v765 = vunpack.c.l.b16 %v708
  %v766 = vunpack.c.l.b16 %v709
  %v767 = vunpack.c.l.b16 %v710
  %v768 = vunpack.c.l.b16 %v711
  %v769 = vunpack.c.l.b16 %v712
  %v770 = vpack.c.b16 %v755, %v754
  %v771 = vpack.c.b16 %v757, %v756
  %v772 = vpack.c.b16 %v759, %v758
  %v773 = vpack.c.b16 %v761, %v760
  %v774 = vpack.c.b16 %v763, %v762
  %v775 = vpack.c.b16 %v765, %v764
  %v776 = vpack.c.b16 %v767, %v766
  %v777 = vpack.c.b16 %v769, %v768
  %786 = vmatprep.subr.bf16.mxu0 0
  %787 = vmatpush1.bf16.msra.mxu0 %v737
  %788 = vmatprep.subr.bf16.mxu0 0
  %789 = vmatpush1.bf16.msra.mxu0 %v736
  %790 = vmatprep.subr.bf16.mxu0 0
  %791 = vmatpush1.bf16.msra.mxu0 %v735
  %792 = vmatprep.subr.bf16.mxu0 0
  %793 = vmatpush1.bf16.msra.mxu0 %v734
  %794 = vmatprep.subr.bf16.mxu0 0
  %795 = vmatpush1.bf16.msra.mxu0 %v733
  %796 = vmatprep.subr.bf16.mxu0 0
  %797 = vmatpush1.bf16.msra.mxu0 %v732
  %798 = vmatprep.subr.bf16.mxu0 0
  %799 = vmatpush1.bf16.msra.mxu0 %v731
  %800 = vmatprep.subr.bf16.mxu0 0
  %801 = vmatpush1.bf16.msra.mxu0 %v730
  %802 = vmatprep.subr.bf16.mxu0 0
  %803 = vmatpush2.bf16.msra.mxu0 0
  %804 = vmatprep.subr.bf16.mxu0 0
  %805 = vmatpush2.bf16.msra.mxu0 0
  %806 = vmatprep.subr.bf16.mxu0 0
  %807 = vmatpush2.bf16.msra.mxu0 0
  %808 = vmatprep.subr.bf16.mxu0 0
  %809 = vmatpush2.bf16.msra.mxu0 0
  %810 = vmatprep.subr.bf16.mxu0 0
  %811 = vmatpush2.bf16.msra.mxu0 0
  %812 = vmatprep.subr.bf16.mxu0 0
  %813 = vmatpush2.bf16.msra.mxu0 0
  %814 = vmatprep.subr.bf16.mxu0 0
  %815 = vmatpush2.bf16.msra.mxu0 0
  %816 = vmatprep.subr.bf16.mxu0 0
  %817 = vmatpush2.bf16.msra.mxu0 0
  %818 = vmatprep.mubr.bf16.mxu0 0
  %819 = vmatmul.mubr.bf16.gmra.mxu0 %v770
  %v820 = vpop.f32.mrf.mxu0
  %v821 = vadd.f32 0.0, %v820
  %v822 = vpop.f32.mrf.mxu0
  %v823 = vpop.f32.mrf.mxu0
  %v824 = vadd.f32 0.0, %v823
  %v825 = vpop.f32.mrf.mxu0
  %826 = vmatprep.mubr.bf16.mxu0 0
  %827 = vmatmul.mubr.bf16.gmra.mxu0 %v771
  %v828 = vpop.f32.mrf.mxu0
  %v829 = vadd.f32 0.0, %v828
  %v830 = vpop.f32.mrf.mxu0
  %v831 = vpop.f32.mrf.mxu0
  %v832 = vadd.f32 0.0, %v831
  %v833 = vpop.f32.mrf.mxu0
  %834 = vmatprep.mubr.bf16.mxu0 0
  %835 = vmatmul.mubr.bf16.gmra.mxu0 %v772
  %v836 = vpop.f32.mrf.mxu0
  %v837 = vadd.f32 0.0, %v836
  %v838 = vpop.f32.mrf.mxu0
  %v839 = vpop.f32.mrf.mxu0
  %v840 = vadd.f32 0.0, %v839
  %v841 = vpop.f32.mrf.mxu0
  %842 = vmatprep.mubr.bf16.mxu0 0
  %843 = vmatmul.mubr.bf16.gmra.mxu0 %v773
  %v844 = vpop.f32.mrf.mxu0
  %v845 = vadd.f32 0.0, %v844
  %v846 = vpop.f32.mrf.mxu0
  %v847 = vpop.f32.mrf.mxu0
  %v848 = vadd.f32 0.0, %v847
  %v849 = vpop.f32.mrf.mxu0
  %850 = vmatprep.mubr.bf16.mxu0 0
  %851 = vmatmul.mubr.bf16.gmra.mxu0 %v774
  %v852 = vpop.f32.mrf.mxu0
  %v853 = vadd.f32 0.0, %v852
  %v854 = vpop.f32.mrf.mxu0
  %v855 = vpop.f32.mrf.mxu0
  %v856 = vadd.f32 0.0, %v855
  %v857 = vpop.f32.mrf.mxu0
  %858 = vmatprep.mubr.bf16.mxu0 0
  %859 = vmatmul.mubr.bf16.gmra.mxu0 %v775
  %v860 = vpop.f32.mrf.mxu0
  %v861 = vadd.f32 0.0, %v860
  %v862 = vpop.f32.mrf.mxu0
  %v863 = vpop.f32.mrf.mxu0
  %v864 = vadd.f32 0.0, %v863
  %v865 = vpop.f32.mrf.mxu0
  %866 = vmatprep.mubr.bf16.mxu0 0
  %867 = vmatmul.mubr.bf16.gmra.mxu0 %v776
  %v868 = vpop.f32.mrf.mxu0
  %v869 = vadd.f32 0.0, %v868
  %v870 = vpop.f32.mrf.mxu0
  %v871 = vpop.f32.mrf.mxu0
  %v872 = vadd.f32 0.0, %v871
  %v873 = vpop.f32.mrf.mxu0
  %874 = vmatprep.mubr.bf16.mxu0 0
  %875 = vmatmul.mubr.bf16.gmra.mxu0 %v777
  %v876 = vpop.f32.mrf.mxu0
  %v877 = vadd.f32 0.0, %v876
  %v878 = vpop.f32.mrf.mxu0
  %v879 = vpop.f32.mrf.mxu0
  %v880 = vadd.f32 0.0, %v879
  %v881 = vpop.f32.mrf.mxu0
  %882 = vdwg.mxu0
  %v883 = vpack.c.bf16 %v824, %v821
  %v884 = vpack.c.bf16 %v832, %v829
  %v885 = vpack.c.bf16 %v840, %v837
  %v886 = vpack.c.bf16 %v848, %v845
  %v887 = vpack.c.bf16 %v856, %v853
  %v888 = vpack.c.bf16 %v864, %v861
  %v889 = vpack.c.bf16 %v872, %v869
  %v890 = vpack.c.bf16 %v880, %v877
  %v892 = vlaneseq
  %v893 = vshrl.u32 %v892, 7
  %v894 = vsub.s32 0, %v893
  %v895 = vrot.slane %v729, %v894
  %v913 = vunpack.c.l.b16 %v713
  %v914 = vunpack.c.l.b16 %v714
  %v915 = vunpack.c.l.b16 %v715
  %v916 = vunpack.c.l.b16 %v716
  %v917 = vunpack.c.l.b16 %v717
  %v918 = vunpack.c.l.b16 %v718
  %v919 = vunpack.c.l.b16 %v719
  %v920 = vunpack.c.l.b16 %v720
  %v921 = vunpack.c.l.b16 %v721
  %v922 = vunpack.c.l.b16 %v722
  %v923 = vunpack.c.l.b16 %v723
  %v924 = vunpack.c.l.b16 %v724
  %v925 = vunpack.c.l.b16 %v725
  %v926 = vunpack.c.l.b16 %v726
  %v927 = vunpack.c.l.b16 %v727
  %v928 = vunpack.c.l.b16 %v728
  %v929 = vpack.c.b16 %v914, %v913
  %v930 = vpack.c.b16 %v916, %v915
  %v931 = vpack.c.b16 %v918, %v917
  %v932 = vpack.c.b16 %v920, %v919
  %v933 = vpack.c.b16 %v922, %v921
  %v934 = vpack.c.b16 %v924, %v923
  %v935 = vpack.c.b16 %v926, %v925
  %v936 = vpack.c.b16 %v928, %v927
  %945 = vmatprep.subr.bf16.mxu0 0
  %946 = vmatpush1.bf16.msra.mxu0 %v936
  %947 = vmatprep.subr.bf16.mxu0 0
  %948 = vmatpush1.bf16.msra.mxu0 %v935
  %949 = vmatprep.subr.bf16.mxu0 0
  %950 = vmatpush1.bf16.msra.mxu0 %v934
  %951 = vmatprep.subr.bf16.mxu0 0
  %952 = vmatpush1.bf16.msra.mxu0 %v933
  %953 = vmatprep.subr.bf16.mxu0 0
  %954 = vmatpush1.bf16.msra.mxu0 %v932
  %955 = vmatprep.subr.bf16.mxu0 0
  %956 = vmatpush1.bf16.msra.mxu0 %v931
  %957 = vmatprep.subr.bf16.mxu0 0
  %958 = vmatpush1.bf16.msra.mxu0 %v930
  %959 = vmatprep.subr.bf16.mxu0 0
  %960 = vmatpush1.bf16.msra.mxu0 %v929
  %961 = vmatprep.subr.bf16.mxu0 0
  %962 = vmatpush2.bf16.msra.mxu0 0
  %963 = vmatprep.subr.bf16.mxu0 0
  %964 = vmatpush2.bf16.msra.mxu0 0
  %965 = vmatprep.subr.bf16.mxu0 0
  %966 = vmatpush2.bf16.msra.mxu0 0
  %967 = vmatprep.subr.bf16.mxu0 0
  %968 = vmatpush2.bf16.msra.mxu0 0
  %969 = vmatprep.subr.bf16.mxu0 0
  %970 = vmatpush2.bf16.msra.mxu0 0
  %971 = vmatprep.subr.bf16.mxu0 0
  %972 = vmatpush2.bf16.msra.mxu0 0
  %973 = vmatprep.subr.bf16.mxu0 0
  %974 = vmatpush2.bf16.msra.mxu0 0
  %975 = vmatprep.subr.bf16.mxu0 0
  %976 = vmatpush2.bf16.msra.mxu0 0
  %977 = vmatprep.mubr.bf16.mxu0 0
  %978 = vmatmul.mubr.bf16.gmra.mxu0 %v883
  %v979 = vpop.f32.mrf.mxu0
  %v980 = vadd.f32 %v895, %v979
  %v981 = vpop.f32.mrf.mxu0
  %v982 = vpop.f32.mrf.mxu0
  %v983 = vadd.f32 %v895, %v982
  %v984 = vpop.f32.mrf.mxu0
  %985 = vmatprep.mubr.bf16.mxu0 0
  %986 = vmatmul.mubr.bf16.gmra.mxu0 %v884
  %v987 = vpop.f32.mrf.mxu0
  %v988 = vadd.f32 %v895, %v987
  %v989 = vpop.f32.mrf.mxu0
  %v990 = vpop.f32.mrf.mxu0
  %v991 = vadd.f32 %v895, %v990
  %v992 = vpop.f32.mrf.mxu0
  %993 = vmatprep.mubr.bf16.mxu0 0
  %994 = vmatmul.mubr.bf16.gmra.mxu0 %v885
  %v995 = vpop.f32.mrf.mxu0
  %v996 = vadd.f32 %v895, %v995
  %v997 = vpop.f32.mrf.mxu0
  %v998 = vpop.f32.mrf.mxu0
  %v999 = vadd.f32 %v895, %v998
  %v1000 = vpop.f32.mrf.mxu0
  %1001 = vmatprep.mubr.bf16.mxu0 0
  %1002 = vmatmul.mubr.bf16.gmra.mxu0 %v886
  %v1003 = vpop.f32.mrf.mxu0
  %v1004 = vadd.f32 %v895, %v1003
  %v1005 = vpop.f32.mrf.mxu0
  %v1006 = vpop.f32.mrf.mxu0
  %v1007 = vadd.f32 %v895, %v1006
  %v1008 = vpop.f32.mrf.mxu0
  %1009 = vmatprep.mubr.bf16.mxu0 0
  %1010 = vmatmul.mubr.bf16.gmra.mxu0 %v887
  %v1011 = vpop.f32.mrf.mxu0
  %v1012 = vadd.f32 %v895, %v1011
  %v1013 = vpop.f32.mrf.mxu0
  %v1014 = vpop.f32.mrf.mxu0
  %v1015 = vadd.f32 %v895, %v1014
  %v1016 = vpop.f32.mrf.mxu0
  %1017 = vmatprep.mubr.bf16.mxu0 0
  %1018 = vmatmul.mubr.bf16.gmra.mxu0 %v888
  %v1019 = vpop.f32.mrf.mxu0
  %v1020 = vadd.f32 %v895, %v1019
  %v1021 = vpop.f32.mrf.mxu0
  %v1022 = vpop.f32.mrf.mxu0
  %v1023 = vadd.f32 %v895, %v1022
  %v1024 = vpop.f32.mrf.mxu0
  %1025 = vmatprep.mubr.bf16.mxu0 0
  %1026 = vmatmul.mubr.bf16.gmra.mxu0 %v889
  %v1027 = vpop.f32.mrf.mxu0
  %v1028 = vadd.f32 %v895, %v1027
  %v1029 = vpop.f32.mrf.mxu0
  %v1030 = vpop.f32.mrf.mxu0
  %v1031 = vadd.f32 %v895, %v1030
  %v1032 = vpop.f32.mrf.mxu0
  %1033 = vmatprep.mubr.bf16.mxu0 0
  %1034 = vmatmul.mubr.bf16.gmra.mxu0 %v890
  %v1035 = vpop.f32.mrf.mxu0
  %v1036 = vadd.f32 %v895, %v1035
  %v1037 = vpop.f32.mrf.mxu0
  %v1038 = vpop.f32.mrf.mxu0
  %v1039 = vadd.f32 %v895, %v1038
  %v1040 = vpop.f32.mrf.mxu0
  %1041 = vdwg.mxu0
  %v1042 = vadd.f32 %v980, %v619
  %v1043 = vadd.f32 %v983, %v622
  %v1044 = vadd.f32 %v988, %v627
  %v1045 = vadd.f32 %v991, %v630
  %v1046 = vadd.f32 %v996, %v635
  %v1047 = vadd.f32 %v999, %v638
  %v1048 = vadd.f32 %v1004, %v643
  %v1049 = vadd.f32 %v1007, %v646
  %v1050 = vadd.f32 %v1012, %v651
  %v1051 = vadd.f32 %v1015, %v654
  %v1052 = vadd.f32 %v1020, %v659
  %v1053 = vadd.f32 %v1023, %v662
  %v1054 = vadd.f32 %v1028, %v667
  %v1055 = vadd.f32 %v1031, %v670
  %v1056 = vadd.f32 %v1036, %v675
  %v1057 = vadd.f32 %v1039, %v678
  %v1058 = vmax.f32 %v1042, 0.0
  %v1059 = vmax.f32 %v1043, 0.0
  %v1060 = vmax.f32 %v1044, 0.0
  %v1061 = vmax.f32 %v1045, 0.0
  %v1062 = vmax.f32 %v1046, 0.0
  %v1063 = vmax.f32 %v1047, 0.0
  %v1064 = vmax.f32 %v1048, 0.0
  %v1065 = vmax.f32 %v1049, 0.0
  %v1066 = vmax.f32 %v1050, 0.0
  %v1067 = vmax.f32 %v1051, 0.0
  %v1068 = vmax.f32 %v1052, 0.0
  %v1069 = vmax.f32 %v1053, 0.0
  %v1070 = vmax.f32 %v1054, 0.0
  %v1071 = vmax.f32 %v1055, 0.0
  %v1072 = vmax.f32 %v1056, 0.0
  %v1073 = vmax.f32 %v1057, 0.0
  %v1074 = vpack.c.bf16 %v1059, %v1058
  %v1075 = vpack.c.bf16 %v1061, %v1060
  %v1076 = vpack.c.bf16 %v1063, %v1062
  %v1077 = vpack.c.bf16 %v1065, %v1064
  %v1078 = vpack.c.bf16 %v1067, %v1066
  %v1079 = vpack.c.bf16 %v1069, %v1068
  %v1080 = vpack.c.bf16 %v1071, %v1070
  %v1081 = vpack.c.bf16 %v1073, %v1072
  %1082 = vmatprep.subr.bf16.mxu0 0
  %1083 = vmatpush1.bf16.msra.mxu0 %v1081
  %1084 = vmatprep.subr.bf16.mxu0 0
  %1085 = vmatpush1.bf16.msra.mxu0 %v1080
  %1086 = vmatprep.subr.bf16.mxu0 0
  %1087 = vmatpush1.bf16.msra.mxu0 %v1079
  %1088 = vmatprep.subr.bf16.mxu0 0
  %1089 = vmatpush1.bf16.msra.mxu0 %v1078
  %1090 = vmatprep.subr.bf16.mxu0 0
  %1091 = vmatpush1.bf16.msra.mxu0 %v1077
  %1092 = vmatprep.subr.bf16.mxu0 0
  %1093 = vmatpush1.bf16.msra.mxu0 %v1076
  %1094 = vmatprep.subr.bf16.mxu0 0
  %1095 = vmatpush1.bf16.msra.mxu0 %v1075
  %1096 = vmatprep.subr.bf16.mxu0 0
  %1097 = vmatpush1.bf16.msra.mxu0 %v1074
  %1098 = vmatprep.subr.bf16.mxu0 0
  %1099 = vmatpush2.bf16.msra.mxu0 0
  %1100 = vmatprep.subr.bf16.mxu0 0
  %1101 = vmatpush2.bf16.msra.mxu0 0
  %1102 = vmatprep.subr.bf16.mxu0 0
  %1103 = vmatpush2.bf16.msra.mxu0 0
  %1104 = vmatprep.subr.bf16.mxu0 0
  %1105 = vmatpush2.bf16.msra.mxu0 0
  %1106 = vmatprep.subr.bf16.mxu0 0
  %1107 = vmatpush2.bf16.msra.mxu0 0
  %1108 = vmatprep.subr.bf16.mxu0 0
  %1109 = vmatpush2.bf16.msra.mxu0 0
  %1110 = vmatprep.subr.bf16.mxu0 0
  %1111 = vmatpush2.bf16.msra.mxu0 0
  %1112 = vmatprep.subr.bf16.mxu0 0
  %1113 = vmatpush2.bf16.msra.mxu0 0
  %1114 = vmatprep.mubr.bf16.mxu0 0
  %1115 = vmatmul.mubr.bf16.gmra.mxu0 %v770
  %v1116 = vpop.f32.mrf.mxu0
  %v1117 = vadd.f32 0.0, %v1116
  %v1118 = vpop.f32.mrf.mxu0
  %v1119 = vpop.f32.mrf.mxu0
  %v1120 = vadd.f32 0.0, %v1119
  %v1121 = vpop.f32.mrf.mxu0
  %1122 = vmatprep.mubr.bf16.mxu0 0
  %1123 = vmatmul.mubr.bf16.gmra.mxu0 %v771
  %v1124 = vpop.f32.mrf.mxu0
  %v1125 = vadd.f32 0.0, %v1124
  %v1126 = vpop.f32.mrf.mxu0
  %v1127 = vpop.f32.mrf.mxu0
  %v1128 = vadd.f32 0.0, %v1127
  %v1129 = vpop.f32.mrf.mxu0
  %1130 = vmatprep.mubr.bf16.mxu0 0
  %1131 = vmatmul.mubr.bf16.gmra.mxu0 %v772
  %v1132 = vpop.f32.mrf.mxu0
  %v1133 = vadd.f32 0.0, %v1132
  %v1134 = vpop.f32.mrf.mxu0
  %v1135 = vpop.f32.mrf.mxu0
  %v1136 = vadd.f32 0.0, %v1135
  %v1137 = vpop.f32.mrf.mxu0
  %1138 = vmatprep.mubr.bf16.mxu0 0
  %1139 = vmatmul.mubr.bf16.gmra.mxu0 %v773
  %v1140 = vpop.f32.mrf.mxu0
  %v1141 = vadd.f32 0.0, %v1140
  %v1142 = vpop.f32.mrf.mxu0
  %v1143 = vpop.f32.mrf.mxu0
  %v1144 = vadd.f32 0.0, %v1143
  %v1145 = vpop.f32.mrf.mxu0
  %1146 = vmatprep.mubr.bf16.mxu0 0
  %1147 = vmatmul.mubr.bf16.gmra.mxu0 %v774
  %v1148 = vpop.f32.mrf.mxu0
  %v1149 = vadd.f32 0.0, %v1148
  %v1150 = vpop.f32.mrf.mxu0
  %v1151 = vpop.f32.mrf.mxu0
  %v1152 = vadd.f32 0.0, %v1151
  %v1153 = vpop.f32.mrf.mxu0
  %1154 = vmatprep.mubr.bf16.mxu0 0
  %1155 = vmatmul.mubr.bf16.gmra.mxu0 %v775
  %v1156 = vpop.f32.mrf.mxu0
  %v1157 = vadd.f32 0.0, %v1156
  %v1158 = vpop.f32.mrf.mxu0
  %v1159 = vpop.f32.mrf.mxu0
  %v1160 = vadd.f32 0.0, %v1159
  %v1161 = vpop.f32.mrf.mxu0
  %1162 = vmatprep.mubr.bf16.mxu0 0
  %1163 = vmatmul.mubr.bf16.gmra.mxu0 %v776
  %v1164 = vpop.f32.mrf.mxu0
  %v1165 = vadd.f32 0.0, %v1164
  %v1166 = vpop.f32.mrf.mxu0
  %v1167 = vpop.f32.mrf.mxu0
  %v1168 = vadd.f32 0.0, %v1167
  %v1169 = vpop.f32.mrf.mxu0
  %1170 = vmatprep.mubr.bf16.mxu0 0
  %1171 = vmatmul.mubr.bf16.gmra.mxu0 %v777
  %v1172 = vpop.f32.mrf.mxu0
  %v1173 = vadd.f32 0.0, %v1172
  %v1174 = vpop.f32.mrf.mxu0
  %v1175 = vpop.f32.mrf.mxu0
  %v1176 = vadd.f32 0.0, %v1175
  %v1177 = vpop.f32.mrf.mxu0
  %1178 = vdwg.mxu0
  %v1179 = vpack.c.bf16 %v1120, %v1117
  %v1180 = vpack.c.bf16 %v1128, %v1125
  %v1181 = vpack.c.bf16 %v1136, %v1133
  %v1182 = vpack.c.bf16 %v1144, %v1141
  %v1183 = vpack.c.bf16 %v1152, %v1149
  %v1184 = vpack.c.bf16 %v1160, %v1157
  %v1185 = vpack.c.bf16 %v1168, %v1165
  %v1186 = vpack.c.bf16 %v1176, %v1173
  %1187 = vmatprep.subr.bf16.mxu0 0
  %1188 = vmatpush1.bf16.msra.mxu0 %v936
  %1189 = vmatprep.subr.bf16.mxu0 0
  %1190 = vmatpush1.bf16.msra.mxu0 %v935
  %1191 = vmatprep.subr.bf16.mxu0 0
  %1192 = vmatpush1.bf16.msra.mxu0 %v934
  %1193 = vmatprep.subr.bf16.mxu0 0
  %1194 = vmatpush1.bf16.msra.mxu0 %v933
  %1195 = vmatprep.subr.bf16.mxu0 0
  %1196 = vmatpush1.bf16.msra.mxu0 %v932
  %1197 = vmatprep.subr.bf16.mxu0 0
  %1198 = vmatpush1.bf16.msra.mxu0 %v931
  %1199 = vmatprep.subr.bf16.mxu0 0
  %1200 = vmatpush1.bf16.msra.mxu0 %v930
  %1201 = vmatprep.subr.bf16.mxu0 0
  %1202 = vmatpush1.bf16.msra.mxu0 %v929
  %1203 = vmatprep.subr.bf16.mxu0 0
  %1204 = vmatpush2.bf16.msra.mxu0 0
  %1205 = vmatprep.subr.bf16.mxu0 0
  %1206 = vmatpush2.bf16.msra.mxu0 0
  %1207 = vmatprep.subr.bf16.mxu0 0
  %1208 = vmatpush2.bf16.msra.mxu0 0
  %1209 = vmatprep.subr.bf16.mxu0 0
  %1210 = vmatpush2.bf16.msra.mxu0 0
  %1211 = vmatprep.subr.bf16.mxu0 0
  %1212 = vmatpush2.bf16.msra.mxu0 0
  %1213 = vmatprep.subr.bf16.mxu0 0
  %1214 = vmatpush2.bf16.msra.mxu0 0
  %1215 = vmatprep.subr.bf16.mxu0 0
  %1216 = vmatpush2.bf16.msra.mxu0 0
  %1217 = vmatprep.subr.bf16.mxu0 0
  %1218 = vmatpush2.bf16.msra.mxu0 0
  %1219 = vmatprep.mubr.bf16.mxu0 0
  %1220 = vmatmul.mubr.bf16.gmra.mxu0 %v1179
  %v1221 = vpop.f32.mrf.mxu0
  %v1222 = vadd.f32 %v895, %v1221
  %v1223 = vpop.f32.mrf.mxu0
  %v1224 = vpop.f32.mrf.mxu0
  %v1225 = vadd.f32 %v895, %v1224
  %v1226 = vpop.f32.mrf.mxu0
  %1227 = vmatprep.mubr.bf16.mxu0 0
  %1228 = vmatmul.mubr.bf16.gmra.mxu0 %v1180
  %v1229 = vpop.f32.mrf.mxu0
  %v1230 = vadd.f32 %v895, %v1229
  %v1231 = vpop.f32.mrf.mxu0
  %v1232 = vpop.f32.mrf.mxu0
  %v1233 = vadd.f32 %v895, %v1232
  %v1234 = vpop.f32.mrf.mxu0
  %1235 = vmatprep.mubr.bf16.mxu0 0
  %1236 = vmatmul.mubr.bf16.gmra.mxu0 %v1181
  %v1237 = vpop.f32.mrf.mxu0
  %v1238 = vadd.f32 %v895, %v1237
  %v1239 = vpop.f32.mrf.mxu0
  %v1240 = vpop.f32.mrf.mxu0
  %v1241 = vadd.f32 %v895, %v1240
  %v1242 = vpop.f32.mrf.mxu0
  %1243 = vmatprep.mubr.bf16.mxu0 0
  %1244 = vmatmul.mubr.bf16.gmra.mxu0 %v1182
  %v1245 = vpop.f32.mrf.mxu0
  %v1246 = vadd.f32 %v895, %v1245
  %v1247 = vpop.f32.mrf.mxu0
  %v1248 = vpop.f32.mrf.mxu0
  %v1249 = vadd.f32 %v895, %v1248
  %v1250 = vpop.f32.mrf.mxu0
  %1251 = vmatprep.mubr.bf16.mxu0 0
  %1252 = vmatmul.mubr.bf16.gmra.mxu0 %v1183
  %v1253 = vpop.f32.mrf.mxu0
  %v1254 = vadd.f32 %v895, %v1253
  %v1255 = vpop.f32.mrf.mxu0
  %v1256 = vpop.f32.mrf.mxu0
  %v1257 = vadd.f32 %v895, %v1256
  %v1258 = vpop.f32.mrf.mxu0
  %1259 = vmatprep.mubr.bf16.mxu0 0
  %1260 = vmatmul.mubr.bf16.gmra.mxu0 %v1184
  %v1261 = vpop.f32.mrf.mxu0
  %v1262 = vadd.f32 %v895, %v1261
  %v1263 = vpop.f32.mrf.mxu0
  %v1264 = vpop.f32.mrf.mxu0
  %v1265 = vadd.f32 %v895, %v1264
  %v1266 = vpop.f32.mrf.mxu0
  %1267 = vmatprep.mubr.bf16.mxu0 0
  %1268 = vmatmul.mubr.bf16.gmra.mxu0 %v1185
  %v1269 = vpop.f32.mrf.mxu0
  %v1270 = vadd.f32 %v895, %v1269
  %v1271 = vpop.f32.mrf.mxu0
  %v1272 = vpop.f32.mrf.mxu0
  %v1273 = vadd.f32 %v895, %v1272
  %v1274 = vpop.f32.mrf.mxu0
  %1275 = vmatprep.mubr.bf16.mxu0 0
  %1276 = vmatmul.mubr.bf16.gmra.mxu0 %v1186
  %v1277 = vpop.f32.mrf.mxu0
  %v1278 = vadd.f32 %v895, %v1277
  %v1279 = vpop.f32.mrf.mxu0
  %v1280 = vpop.f32.mrf.mxu0
  %v1281 = vadd.f32 %v895, %v1280
  %v1282 = vpop.f32.mrf.mxu0
  %1283 = vdwg.mxu0
  %v1284 = vadd.f32 %v1222, %v619
  %v1285 = vadd.f32 %v1225, %v622
  %v1286 = vadd.f32 %v1230, %v627
  %v1287 = vadd.f32 %v1233, %v630
  %v1288 = vadd.f32 %v1238, %v635
  %v1289 = vadd.f32 %v1241, %v638
  %v1290 = vadd.f32 %v1246, %v643
  %v1291 = vadd.f32 %v1249, %v646
  %v1292 = vadd.f32 %v1254, %v651
  %v1293 = vadd.f32 %v1257, %v654
  %v1294 = vadd.f32 %v1262, %v659
  %v1295 = vadd.f32 %v1265, %v662
  %v1296 = vadd.f32 %v1270, %v667
  %v1297 = vadd.f32 %v1273, %v670
  %v1298 = vadd.f32 %v1278, %v675
  %v1299 = vadd.f32 %v1281, %v678
  %v1300 = vmax.f32 %v1284, 0.0
  %v1301 = vmax.f32 %v1285, 0.0
  %v1302 = vmax.f32 %v1286, 0.0
  %v1303 = vmax.f32 %v1287, 0.0
  %v1304 = vmax.f32 %v1288, 0.0
  %v1305 = vmax.f32 %v1289, 0.0
  %v1306 = vmax.f32 %v1290, 0.0
  %v1307 = vmax.f32 %v1291, 0.0
  %v1308 = vmax.f32 %v1292, 0.0
  %v1309 = vmax.f32 %v1293, 0.0
  %v1310 = vmax.f32 %v1294, 0.0
  %v1311 = vmax.f32 %v1295, 0.0
  %v1312 = vmax.f32 %v1296, 0.0
  %v1313 = vmax.f32 %v1297, 0.0
  %v1314 = vmax.f32 %v1298, 0.0
  %v1315 = vmax.f32 %v1299, 0.0
  %v1316 = vpack.c.bf16 %v1301, %v1300
  %v1317 = vpack.c.bf16 %v1303, %v1302
  %v1318 = vpack.c.bf16 %v1305, %v1304
  %v1319 = vpack.c.bf16 %v1307, %v1306
  %v1320 = vpack.c.bf16 %v1309, %v1308
  %v1321 = vpack.c.bf16 %v1311, %v1310
  %v1322 = vpack.c.bf16 %v1313, %v1312
  %v1323 = vpack.c.bf16 %v1315, %v1314
  %1324 = vmatprep.subr.bf16.mxu0 0
  %1325 = vmatpush1.bf16.msra.mxu0 %v1323
  %1326 = vmatprep.subr.bf16.mxu0 0
  %1327 = vmatpush1.bf16.msra.mxu0 %v1322
  %1328 = vmatprep.subr.bf16.mxu0 0
  %1329 = vmatpush1.bf16.msra.mxu0 %v1321
  %1330 = vmatprep.subr.bf16.mxu0 0
  %1331 = vmatpush1.bf16.msra.mxu0 %v1320
  %1332 = vmatprep.subr.bf16.mxu0 0
  %1333 = vmatpush1.bf16.msra.mxu0 %v1319
  %1334 = vmatprep.subr.bf16.mxu0 0
  %1335 = vmatpush1.bf16.msra.mxu0 %v1318
  %1336 = vmatprep.subr.bf16.mxu0 0
  %1337 = vmatpush1.bf16.msra.mxu0 %v1317
  %1338 = vmatprep.subr.bf16.mxu0 0
  %1339 = vmatpush1.bf16.msra.mxu0 %v1316
  %1340 = vmatprep.subr.bf16.mxu0 0
  %1341 = vmatpush2.bf16.msra.mxu0 0
  %1342 = vmatprep.subr.bf16.mxu0 0
  %1343 = vmatpush2.bf16.msra.mxu0 0
  %1344 = vmatprep.subr.bf16.mxu0 0
  %1345 = vmatpush2.bf16.msra.mxu0 0
  %1346 = vmatprep.subr.bf16.mxu0 0
  %1347 = vmatpush2.bf16.msra.mxu0 0
  %1348 = vmatprep.subr.bf16.mxu0 0
  %1349 = vmatpush2.bf16.msra.mxu0 0
  %1350 = vmatprep.subr.bf16.mxu0 0
  %1351 = vmatpush2.bf16.msra.mxu0 0
  %1352 = vmatprep.subr.bf16.mxu0 0
  %1353 = vmatpush2.bf16.msra.mxu0 0
  %1354 = vmatprep.subr.bf16.mxu0 0
  %1355 = vmatpush2.bf16.msra.mxu0 0
  %1356 = vmatprep.mubr.bf16.mxu0 0
  %1357 = vmatmul.mubr.bf16.gmra.mxu0 %v770
  %v1358 = vpop.f32.mrf.mxu0
  %v1359 = vadd.f32 0.0, %v1358
  %v1360 = vpop.f32.mrf.mxu0
  %v1361 = vpop.f32.mrf.mxu0
  %v1362 = vadd.f32 0.0, %v1361
  %v1363 = vpop.f32.mrf.mxu0
  %1364 = vmatprep.mubr.bf16.mxu0 0
  %1365 = vmatmul.mubr.bf16.gmra.mxu0 %v771
  %v1366 = vpop.f32.mrf.mxu0
  %v1367 = vadd.f32 0.0, %v1366
  %v1368 = vpop.f32.mrf.mxu0
  %v1369 = vpop.f32.mrf.mxu0
  %v1370 = vadd.f32 0.0, %v1369
  %v1371 = vpop.f32.mrf.mxu0
  %1372 = vmatprep.mubr.bf16.mxu0 0
  %1373 = vmatmul.mubr.bf16.gmra.mxu0 %v772
  %v1374 = vpop.f32.mrf.mxu0
  %v1375 = vadd.f32 0.0, %v1374
  %v1376 = vpop.f32.mrf.mxu0
  %v1377 = vpop.f32.mrf.mxu0
  %v1378 = vadd.f32 0.0, %v1377
  %v1379 = vpop.f32.mrf.mxu0
  %1380 = vmatprep.mubr.bf16.mxu0 0
  %1381 = vmatmul.mubr.bf16.gmra.mxu0 %v773
  %v1382 = vpop.f32.mrf.mxu0
  %v1383 = vadd.f32 0.0, %v1382
  %v1384 = vpop.f32.mrf.mxu0
  %v1385 = vpop.f32.mrf.mxu0
  %v1386 = vadd.f32 0.0, %v1385
  %v1387 = vpop.f32.mrf.mxu0
  %1388 = vmatprep.mubr.bf16.mxu0 0
  %1389 = vmatmul.mubr.bf16.gmra.mxu0 %v774
  %v1390 = vpop.f32.mrf.mxu0
  %v1391 = vadd.f32 0.0, %v1390
  %v1392 = vpop.f32.mrf.mxu0
  %v1393 = vpop.f32.mrf.mxu0
  %v1394 = vadd.f32 0.0, %v1393
  %v1395 = vpop.f32.mrf.mxu0
  %1396 = vmatprep.mubr.bf16.mxu0 0
  %1397 = vmatmul.mubr.bf16.gmra.mxu0 %v775
  %v1398 = vpop.f32.mrf.mxu0
  %v1399 = vadd.f32 0.0, %v1398
  %v1400 = vpop.f32.mrf.mxu0
  %v1401 = vpop.f32.mrf.mxu0
  %v1402 = vadd.f32 0.0, %v1401
  %v1403 = vpop.f32.mrf.mxu0
  %1404 = vmatprep.mubr.bf16.mxu0 0
  %1405 = vmatmul.mubr.bf16.gmra.mxu0 %v776
  %v1406 = vpop.f32.mrf.mxu0
  %v1407 = vadd.f32 0.0, %v1406
  %v1408 = vpop.f32.mrf.mxu0
  %v1409 = vpop.f32.mrf.mxu0
  %v1410 = vadd.f32 0.0, %v1409
  %v1411 = vpop.f32.mrf.mxu0
  %1412 = vmatprep.mubr.bf16.mxu0 0
  %1413 = vmatmul.mubr.bf16.gmra.mxu0 %v777
  %v1414 = vpop.f32.mrf.mxu0
  %v1415 = vadd.f32 0.0, %v1414
  %v1416 = vpop.f32.mrf.mxu0
  %v1417 = vpop.f32.mrf.mxu0
  %v1418 = vadd.f32 0.0, %v1417
  %v1419 = vpop.f32.mrf.mxu0
  %1420 = vdwg.mxu0
  %v1421 = vpack.c.bf16 %v1362, %v1359
  %v1422 = vpack.c.bf16 %v1370, %v1367
  %v1423 = vpack.c.bf16 %v1378, %v1375
  %v1424 = vpack.c.bf16 %v1386, %v1383
  %v1425 = vpack.c.bf16 %v1394, %v1391
  %v1426 = vpack.c.bf16 %v1402, %v1399
  %v1427 = vpack.c.bf16 %v1410, %v1407
  %v1428 = vpack.c.bf16 %v1418, %v1415
  %1429 = vmatprep.subr.bf16.mxu0 0
  %1430 = vmatpush1.bf16.msra.mxu0 %v936
  %1431 = vmatprep.subr.bf16.mxu0 0
  %1432 = vmatpush1.bf16.msra.mxu0 %v935
  %1433 = vmatprep.subr.bf16.mxu0 0
  %1434 = vmatpush1.bf16.msra.mxu0 %v934
  %1435 = vmatprep.subr.bf16.mxu0 0
  %1436 = vmatpush1.bf16.msra.mxu0 %v933
  %1437 = vmatprep.subr.bf16.mxu0 0
  %1438 = vmatpush1.bf16.msra.mxu0 %v932
  %1439 = vmatprep.subr.bf16.mxu0 0
  %1440 = vmatpush1.bf16.msra.mxu0 %v931
  %1441 = vmatprep.subr.bf16.mxu0 0
  %1442 = vmatpush1.bf16.msra.mxu0 %v930
  %1443 = vmatprep.subr.bf16.mxu0 0
  %1444 = vmatpush1.bf16.msra.mxu0 %v929
  %1445 = vmatprep.subr.bf16.mxu0 0
  %1446 = vmatpush2.bf16.msra.mxu0 0
  %1447 = vmatprep.subr.bf16.mxu0 0
  %1448 = vmatpush2.bf16.msra.mxu0 0
  %1449 = vmatprep.subr.bf16.mxu0 0
  %1450 = vmatpush2.bf16.msra.mxu0 0
  %1451 = vmatprep.subr.bf16.mxu0 0
  %1452 = vmatpush2.bf16.msra.mxu0 0
  %1453 = vmatprep.subr.bf16.mxu0 0
  %1454 = vmatpush2.bf16.msra.mxu0 0
  %1455 = vmatprep.subr.bf16.mxu0 0
  %1456 = vmatpush2.bf16.msra.mxu0 0
  %1457 = vmatprep.subr.bf16.mxu0 0
  %1458 = vmatpush2.bf16.msra.mxu0 0
  %1459 = vmatprep.subr.bf16.mxu0 0
  %1460 = vmatpush2.bf16.msra.mxu0 0
  %1461 = vmatprep.mubr.bf16.mxu0 0
  %1462 = vmatmul.mubr.bf16.gmra.mxu0 %v1421
  %v1463 = vpop.f32.mrf.mxu0
  %v1464 = vadd.f32 %v895, %v1463
  %v1465 = vpop.f32.mrf.mxu0
  %v1466 = vpop.f32.mrf.mxu0
  %v1467 = vadd.f32 %v895, %v1466
  %v1468 = vpop.f32.mrf.mxu0
  %1469 = vmatprep.mubr.bf16.mxu0 0
  %1470 = vmatmul.mubr.bf16.gmra.mxu0 %v1422
  %v1471 = vpop.f32.mrf.mxu0
  %v1472 = vadd.f32 %v895, %v1471
  %v1473 = vpop.f32.mrf.mxu0
  %v1474 = vpop.f32.mrf.mxu0
  %v1475 = vadd.f32 %v895, %v1474
  %v1476 = vpop.f32.mrf.mxu0
  %1477 = vmatprep.mubr.bf16.mxu0 0
  %1478 = vmatmul.mubr.bf16.gmra.mxu0 %v1423
  %v1479 = vpop.f32.mrf.mxu0
  %v1480 = vadd.f32 %v895, %v1479
  %v1481 = vpop.f32.mrf.mxu0
  %v1482 = vpop.f32.mrf.mxu0
  %v1483 = vadd.f32 %v895, %v1482
  %v1484 = vpop.f32.mrf.mxu0
  %1485 = vmatprep.mubr.bf16.mxu0 0
  %1486 = vmatmul.mubr.bf16.gmra.mxu0 %v1424
  %v1487 = vpop.f32.mrf.mxu0
  %v1488 = vadd.f32 %v895, %v1487
  %v1489 = vpop.f32.mrf.mxu0
  %v1490 = vpop.f32.mrf.mxu0
  %v1491 = vadd.f32 %v895, %v1490
  %v1492 = vpop.f32.mrf.mxu0
  %1493 = vmatprep.mubr.bf16.mxu0 0
  %1494 = vmatmul.mubr.bf16.gmra.mxu0 %v1425
  %v1495 = vpop.f32.mrf.mxu0
  %v1496 = vadd.f32 %v895, %v1495
  %v1497 = vpop.f32.mrf.mxu0
  %v1498 = vpop.f32.mrf.mxu0
  %v1499 = vadd.f32 %v895, %v1498
  %v1500 = vpop.f32.mrf.mxu0
  %1501 = vmatprep.mubr.bf16.mxu0 0
  %1502 = vmatmul.mubr.bf16.gmra.mxu0 %v1426
  %v1503 = vpop.f32.mrf.mxu0
  %v1504 = vadd.f32 %v895, %v1503
  %v1505 = vpop.f32.mrf.mxu0
  %v1506 = vpop.f32.mrf.mxu0
  %v1507 = vadd.f32 %v895, %v1506
  %v1508 = vpop.f32.mrf.mxu0
  %1509 = vmatprep.mubr.bf16.mxu0 0
  %1510 = vmatmul.mubr.bf16.gmra.mxu0 %v1427
  %v1511 = vpop.f32.mrf.mxu0
  %v1512 = vadd.f32 %v895, %v1511
  %v1513 = vpop.f32.mrf.mxu0
  %v1514 = vpop.f32.mrf.mxu0
  %v1515 = vadd.f32 %v895, %v1514
  %v1516 = vpop.f32.mrf.mxu0
  %1517 = vmatprep.mubr.bf16.mxu0 0
  %1518 = vmatmul.mubr.bf16.gmra.mxu0 %v1428
  %v1519 = vpop.f32.mrf.mxu0
  %v1520 = vadd.f32 %v895, %v1519
  %v1521 = vpop.f32.mrf.mxu0
  %v1522 = vpop.f32.mrf.mxu0
  %v1523 = vadd.f32 %v895, %v1522
  %v1524 = vpop.f32.mrf.mxu0
  %1525 = vdwg.mxu0
  %v1526 = vadd.f32 %v1464, %v619
  %v1527 = vadd.f32 %v1467, %v622
  %v1528 = vadd.f32 %v1472, %v627
  %v1529 = vadd.f32 %v1475, %v630
  %v1530 = vadd.f32 %v1480, %v635
  %v1531 = vadd.f32 %v1483, %v638
  %v1532 = vadd.f32 %v1488, %v643
  %v1533 = vadd.f32 %v1491, %v646
  %v1534 = vadd.f32 %v1496, %v651
  %v1535 = vadd.f32 %v1499, %v654
  %v1536 = vadd.f32 %v1504, %v659
  %v1537 = vadd.f32 %v1507, %v662
  %v1538 = vadd.f32 %v1512, %v667
  %v1539 = vadd.f32 %v1515, %v670
  %v1540 = vadd.f32 %v1520, %v675
  %v1541 = vadd.f32 %v1523, %v678
  %v1542 = vmax.f32 %v1526, 0.0
  %v1543 = vmax.f32 %v1527, 0.0
  %v1544 = vmax.f32 %v1528, 0.0
  %v1545 = vmax.f32 %v1529, 0.0
  %v1546 = vmax.f32 %v1530, 0.0
  %v1547 = vmax.f32 %v1531, 0.0
  %v1548 = vmax.f32 %v1532, 0.0
  %v1549 = vmax.f32 %v1533, 0.0
  %v1550 = vmax.f32 %v1534, 0.0
  %v1551 = vmax.f32 %v1535, 0.0
  %v1552 = vmax.f32 %v1536, 0.0
  %v1553 = vmax.f32 %v1537, 0.0
  %v1554 = vmax.f32 %v1538, 0.0
  %v1555 = vmax.f32 %v1539, 0.0
  %v1556 = vmax.f32 %v1540, 0.0
  %v1557 = vmax.f32 %v1541, 0.0
  %v1558 = vld [vmem:[%s4] sm:$0xf]
  %v1559 = vld [vmem:[%s4 + $0x4] sm:$0xf]
  %v1560 = vld [vmem:[%s4 + $0x8] sm:$0xf]
  %v1561 = vld [vmem:[%s4 + $0xc] sm:$0xf]
  %v1562 = vld [vmem:[%s4 + $0x10] sm:$0xf]
  %v1563 = vld [vmem:[%s4 + $0x14] sm:$0xf]
  %v1564 = vld [vmem:[%s4 + $0x18] sm:$0xf]
  %v1565 = vld [vmem:[%s4 + $0x1c] sm:$0xf]
  %v1566 = vld [vmem:[%s4 + $0x20] sm:$0xf]
  %v1567 = vld [vmem:[%s4 + $0x24] sm:$0xf]
  %v1568 = vld [vmem:[%s4 + $0x28] sm:$0xf]
  %v1569 = vld [vmem:[%s4 + $0x2c] sm:$0xf]
  %v1570 = vld [vmem:[%s4 + $0x30] sm:$0xf]
  %v1571 = vld [vmem:[%s4 + $0x34] sm:$0xf]
  %v1572 = vld [vmem:[%s4 + $0x38] sm:$0xf]
  %v1573 = vld [vmem:[%s4 + $0x3c] sm:$0xf]
  %v1574 = vpack.c.bf16 %v1543, %v1542
  %v1575 = vpack.c.bf16 %v1545, %v1544
  %v1576 = vpack.c.bf16 %v1547, %v1546
  %v1577 = vpack.c.bf16 %v1549, %v1548
  %v1578 = vpack.c.bf16 %v1551, %v1550
  %v1579 = vpack.c.bf16 %v1553, %v1552
  %v1580 = vpack.c.bf16 %v1555, %v1554
  %v1581 = vpack.c.bf16 %v1557, %v1556
  %v1598 = vunpack.c.l.b16 %v1558
  %v1599 = vunpack.c.l.b16 %v1559
  %v1600 = vunpack.c.l.b16 %v1560
  %v1601 = vunpack.c.l.b16 %v1561
  %v1602 = vunpack.c.l.b16 %v1562
  %v1603 = vunpack.c.l.b16 %v1563
  %v1604 = vunpack.c.l.b16 %v1564
  %v1605 = vunpack.c.l.b16 %v1565
  %v1606 = vunpack.c.l.b16 %v1566
  %v1607 = vunpack.c.l.b16 %v1567
  %v1608 = vunpack.c.l.b16 %v1568
  %v1609 = vunpack.c.l.b16 %v1569
  %v1610 = vunpack.c.l.b16 %v1570
  %v1611 = vunpack.c.l.b16 %v1571
  %v1612 = vunpack.c.l.b16 %v1572
  %v1613 = vunpack.c.l.b16 %v1573
  %v1614 = vpack.c.b16 %v1599, %v1598
  %v1615 = vpack.c.b16 %v1601, %v1600
  %v1616 = vpack.c.b16 %v1603, %v1602
  %v1617 = vpack.c.b16 %v1605, %v1604
  %v1618 = vpack.c.b16 %v1607, %v1606
  %v1619 = vpack.c.b16 %v1609, %v1608
  %v1620 = vpack.c.b16 %v1611, %v1610
  %v1621 = vpack.c.b16 %v1613, %v1612
  %1630 = vmatprep.subr.bf16.mxu0 0
  %1631 = vmatpush1.bf16.msra.mxu0 %v1581
  %1632 = vmatprep.subr.bf16.mxu0 0
  %1633 = vmatpush1.bf16.msra.mxu0 %v1580
  %1634 = vmatprep.subr.bf16.mxu0 0
  %1635 = vmatpush1.bf16.msra.mxu0 %v1579
  %1636 = vmatprep.subr.bf16.mxu0 0
  %1637 = vmatpush1.bf16.msra.mxu0 %v1578
  %1638 = vmatprep.subr.bf16.mxu0 0
  %1639 = vmatpush1.bf16.msra.mxu0 %v1577
  %1640 = vmatprep.subr.bf16.mxu0 0
  %1641 = vmatpush1.bf16.msra.mxu0 %v1576
  %1642 = vmatprep.subr.bf16.mxu0 0
  %1643 = vmatpush1.bf16.msra.mxu0 %v1575
  %1644 = vmatprep.subr.bf16.mxu0 0
  %1645 = vmatpush1.bf16.msra.mxu0 %v1574
  %1646 = vmatprep.subr.bf16.mxu0 0
  %1647 = vmatpush2.bf16.msra.mxu0 0
  %1648 = vmatprep.subr.bf16.mxu0 0
  %1649 = vmatpush2.bf16.msra.mxu0 0
  %1650 = vmatprep.subr.bf16.mxu0 0
  %1651 = vmatpush2.bf16.msra.mxu0 0
  %1652 = vmatprep.subr.bf16.mxu0 0
  %1653 = vmatpush2.bf16.msra.mxu0 0
  %1654 = vmatprep.subr.bf16.mxu0 0
  %1655 = vmatpush2.bf16.msra.mxu0 0
  %1656 = vmatprep.subr.bf16.mxu0 0
  %1657 = vmatpush2.bf16.msra.mxu0 0
  %1658 = vmatprep.subr.bf16.mxu0 0
  %1659 = vmatpush2.bf16.msra.mxu0 0
  %1660 = vmatprep.subr.bf16.mxu0 0
  %1661 = vmatpush2.bf16.msra.mxu0 0
  %1662 = vmatprep.mubr.bf16.mxu0 0
  %1663 = vmatmul.mubr.bf16.gmra.mxu0 %v1614
  %v1664 = vpop.f32.mrf.mxu0
  %v1665 = vadd.f32 0.0, %v1664
  %v1666 = vpop.f32.mrf.mxu0
  %v1667 = vpop.f32.mrf.mxu0
  %v1668 = vadd.f32 0.0, %v1667
  %v1669 = vpop.f32.mrf.mxu0
  %1670 = vmatprep.mubr.bf16.mxu0 0
  %1671 = vmatmul.mubr.bf16.gmra.mxu0 %v1615
  %v1672 = vpop.f32.mrf.mxu0
  %v1673 = vadd.f32 0.0, %v1672
  %v1674 = vpop.f32.mrf.mxu0
  %v1675 = vpop.f32.mrf.mxu0
  %v1676 = vadd.f32 0.0, %v1675
  %v1677 = vpop.f32.mrf.mxu0
  %1678 = vmatprep.mubr.bf16.mxu0 0
  %1679 = vmatmul.mubr.bf16.gmra.mxu0 %v1616
  %v1680 = vpop.f32.mrf.mxu0
  %v1681 = vadd.f32 0.0, %v1680
  %v1682 = vpop.f32.mrf.mxu0
  %v1683 = vpop.f32.mrf.mxu0
  %v1684 = vadd.f32 0.0, %v1683
  %v1685 = vpop.f32.mrf.mxu0
  %1686 = vmatprep.mubr.bf16.mxu0 0
  %1687 = vmatmul.mubr.bf16.gmra.mxu0 %v1617
  %v1688 = vpop.f32.mrf.mxu0
  %v1689 = vadd.f32 0.0, %v1688
  %v1690 = vpop.f32.mrf.mxu0
  %v1691 = vpop.f32.mrf.mxu0
  %v1692 = vadd.f32 0.0, %v1691
  %v1693 = vpop.f32.mrf.mxu0
  %1694 = vmatprep.mubr.bf16.mxu0 0
  %1695 = vmatmul.mubr.bf16.gmra.mxu0 %v1618
  %v1696 = vpop.f32.mrf.mxu0
  %v1697 = vadd.f32 0.0, %v1696
  %v1698 = vpop.f32.mrf.mxu0
  %v1699 = vpop.f32.mrf.mxu0
  %v1700 = vadd.f32 0.0, %v1699
  %v1701 = vpop.f32.mrf.mxu0
  %1702 = vmatprep.mubr.bf16.mxu0 0
  %1703 = vmatmul.mubr.bf16.gmra.mxu0 %v1619
  %v1704 = vpop.f32.mrf.mxu0
  %v1705 = vadd.f32 0.0, %v1704
  %v1706 = vpop.f32.mrf.mxu0
  %v1707 = vpop.f32.mrf.mxu0
  %v1708 = vadd.f32 0.0, %v1707
  %v1709 = vpop.f32.mrf.mxu0
  %1710 = vmatprep.mubr.bf16.mxu0 0
  %1711 = vmatmul.mubr.bf16.gmra.mxu0 %v1620
  %v1712 = vpop.f32.mrf.mxu0
  %v1713 = vadd.f32 0.0, %v1712
  %v1714 = vpop.f32.mrf.mxu0
  %v1715 = vpop.f32.mrf.mxu0
  %v1716 = vadd.f32 0.0, %v1715
  %v1717 = vpop.f32.mrf.mxu0
  %1718 = vmatprep.mubr.bf16.mxu0 0
  %1719 = vmatmul.mubr.bf16.gmra.mxu0 %v1621
  %v1720 = vpop.f32.mrf.mxu0
  %v1721 = vadd.f32 0.0, %v1720
  %v1722 = vpop.f32.mrf.mxu0
  %v1723 = vpop.f32.mrf.mxu0
  %v1724 = vadd.f32 0.0, %v1723
  %v1725 = vpop.f32.mrf.mxu0
  %1726 = vdwg.mxu0
  %v1727 = vmax.f32 %v1665, 0.0
  %v1728 = vmax.f32 %v1668, 0.0
  %v1729 = vmax.f32 %v1673, 0.0
  %v1730 = vmax.f32 %v1676, 0.0
  %v1731 = vmax.f32 %v1681, 0.0
  %v1732 = vmax.f32 %v1684, 0.0
  %v1733 = vmax.f32 %v1689, 0.0
  %v1734 = vmax.f32 %v1692, 0.0
  %v1735 = vmax.f32 %v1697, 0.0
  %v1736 = vmax.f32 %v1700, 0.0
  %v1737 = vmax.f32 %v1705, 0.0
  %v1738 = vmax.f32 %v1708, 0.0
  %v1739 = vmax.f32 %v1713, 0.0
  %v1740 = vmax.f32 %v1716, 0.0
  %v1741 = vmax.f32 %v1721, 0.0
  %v1742 = vmax.f32 %v1724, 0.0
  %v1743 = vpack.c.bf16 %v1728, %v1727
  %v1744 = vpack.c.bf16 %v1730, %v1729
  %v1745 = vpack.c.bf16 %v1732, %v1731
  %v1746 = vpack.c.bf16 %v1734, %v1733
  %v1747 = vpack.c.bf16 %v1736, %v1735
  %v1748 = vpack.c.bf16 %v1738, %v1737
  %v1749 = vpack.c.bf16 %v1740, %v1739
  %v1750 = vpack.c.bf16 %v1742, %v1741
  %v1751 = vld [vmem:[%s12] sm:$0xf]
  %v1752 = vld [vmem:[%s12 + $0x4] sm:$0xf]
  %v1753 = vld [vmem:[%s12 + $0x8] sm:$0xf]
  %v1754 = vld [vmem:[%s12 + $0xc] sm:$0xf]
  %v1755 = vld [vmem:[%s12 + $0x10] sm:$0xf]
  %v1756 = vld [vmem:[%s12 + $0x14] sm:$0xf]
  %v1757 = vld [vmem:[%s12 + $0x18] sm:$0xf]
  %v1758 = vld [vmem:[%s12 + $0x1c] sm:$0xf]
  %v1759 = vld [vmem:[%s12 + $0x20] sm:$0xf]
  %v1760 = vld [vmem:[%s12 + $0x24] sm:$0xf]
  %v1761 = vld [vmem:[%s12 + $0x28] sm:$0xf]
  %v1762 = vld [vmem:[%s12 + $0x2c] sm:$0xf]
  %v1763 = vld [vmem:[%s12 + $0x30] sm:$0xf]
  %v1764 = vld [vmem:[%s12 + $0x34] sm:$0xf]
  %v1765 = vld [vmem:[%s12 + $0x38] sm:$0xf]
  %v1766 = vld [vmem:[%s12 + $0x3c] sm:$0xf]
  %v1767 = vld [vmem:[%s13] sm:$0x1]
  %v1769 = vlaneseq
  %v1770 = vshrl.u32 %v1769, 7
  %v1771 = vsub.s32 0, %v1770
  %v1772 = vrot.slane %v1767, %v1771
  %v1790 = vunpack.c.l.b16 %v1751
  %v1791 = vunpack.c.l.b16 %v1752
  %v1792 = vunpack.c.l.b16 %v1753
  %v1793 = vunpack.c.l.b16 %v1754
  %v1794 = vunpack.c.l.b16 %v1755
  %v1795 = vunpack.c.l.b16 %v1756
  %v1796 = vunpack.c.l.b16 %v1757
  %v1797 = vunpack.c.l.b16 %v1758
  %v1798 = vunpack.c.l.b16 %v1759
  %v1799 = vunpack.c.l.b16 %v1760
  %v1800 = vunpack.c.l.b16 %v1761
  %v1801 = vunpack.c.l.b16 %v1762
  %v1802 = vunpack.c.l.b16 %v1763
  %v1803 = vunpack.c.l.b16 %v1764
  %v1804 = vunpack.c.l.b16 %v1765
  %v1805 = vunpack.c.l.b16 %v1766
  %v1806 = vpack.c.b16 %v1791, %v1790
  %v1807 = vpack.c.b16 %v1793, %v1792
  %v1808 = vpack.c.b16 %v1795, %v1794
  %v1809 = vpack.c.b16 %v1797, %v1796
  %v1810 = vpack.c.b16 %v1799, %v1798
  %v1811 = vpack.c.b16 %v1801, %v1800
  %v1812 = vpack.c.b16 %v1803, %v1802
  %v1813 = vpack.c.b16 %v1805, %v1804
  %1822 = vmatprep.subr.bf16.mxu0 0
  %1823 = vmatpush1.bf16.msra.mxu0 %v1813
  %1824 = vmatprep.subr.bf16.mxu0 0
  %1825 = vmatpush1.bf16.msra.mxu0 %v1812
  %1826 = vmatprep.subr.bf16.mxu0 0
  %1827 = vmatpush1.bf16.msra.mxu0 %v1811
  %1828 = vmatprep.subr.bf16.mxu0 0
  %1829 = vmatpush1.bf16.msra.mxu0 %v1810
  %1830 = vmatprep.subr.bf16.mxu0 0
  %1831 = vmatpush1.bf16.msra.mxu0 %v1809
  %1832 = vmatprep.subr.bf16.mxu0 0
  %1833 = vmatpush1.bf16.msra.mxu0 %v1808
  %1834 = vmatprep.subr.bf16.mxu0 0
  %1835 = vmatpush1.bf16.msra.mxu0 %v1807
  %1836 = vmatprep.subr.bf16.mxu0 0
  %1837 = vmatpush1.bf16.msra.mxu0 %v1806
  %1838 = vmatprep.subr.bf16.mxu0 0
  %1839 = vmatpush2.bf16.msra.mxu0 0
  %1840 = vmatprep.subr.bf16.mxu0 0
  %1841 = vmatpush2.bf16.msra.mxu0 0
  %1842 = vmatprep.subr.bf16.mxu0 0
  %1843 = vmatpush2.bf16.msra.mxu0 0
  %1844 = vmatprep.subr.bf16.mxu0 0
  %1845 = vmatpush2.bf16.msra.mxu0 0
  %1846 = vmatprep.subr.bf16.mxu0 0
  %1847 = vmatpush2.bf16.msra.mxu0 0
  %1848 = vmatprep.subr.bf16.mxu0 0
  %1849 = vmatpush2.bf16.msra.mxu0 0
  %1850 = vmatprep.subr.bf16.mxu0 0
  %1851 = vmatpush2.bf16.msra.mxu0 0
  %1852 = vmatprep.subr.bf16.mxu0 0
  %1853 = vmatpush2.bf16.msra.mxu0 0
  %1854 = vmatprep.mubr.bf16.mxu0 0
  %1855 = vmatmul.mubr.bf16.gmra.mxu0 %v1743
  %v1856 = vpop.f32.mrf.mxu0
  %v1857 = vadd.f32 %v1772, %v1856
  %v1858 = vpop.f32.mrf.mxu0
  %v1859 = vpop.f32.mrf.mxu0
  %v1860 = vadd.f32 %v1772, %v1859
  %v1861 = vpop.f32.mrf.mxu0
  %1862 = vmatprep.mubr.bf16.mxu0 0
  %1863 = vmatmul.mubr.bf16.gmra.mxu0 %v1744
  %v1864 = vpop.f32.mrf.mxu0
  %v1865 = vadd.f32 %v1772, %v1864
  %v1866 = vpop.f32.mrf.mxu0
  %v1867 = vpop.f32.mrf.mxu0
  %v1868 = vadd.f32 %v1772, %v1867
  %v1869 = vpop.f32.mrf.mxu0
  %1870 = vmatprep.mubr.bf16.mxu0 0
  %1871 = vmatmul.mubr.bf16.gmra.mxu0 %v1745
  %v1872 = vpop.f32.mrf.mxu0
  %v1873 = vadd.f32 %v1772, %v1872
  %v1874 = vpop.f32.mrf.mxu0
  %v1875 = vpop.f32.mrf.mxu0
  %v1876 = vadd.f32 %v1772, %v1875
  %v1877 = vpop.f32.mrf.mxu0
  %1878 = vmatprep.mubr.bf16.mxu0 0
  %1879 = vmatmul.mubr.bf16.gmra.mxu0 %v1746
  %v1880 = vpop.f32.mrf.mxu0
  %v1881 = vadd.f32 %v1772, %v1880
  %v1882 = vpop.f32.mrf.mxu0
  %v1883 = vpop.f32.mrf.mxu0
  %v1884 = vadd.f32 %v1772, %v1883
  %v1885 = vpop.f32.mrf.mxu0
  %1886 = vmatprep.mubr.bf16.mxu0 0
  %1887 = vmatmul.mubr.bf16.gmra.mxu0 %v1747
  %v1888 = vpop.f32.mrf.mxu0
  %v1889 = vadd.f32 %v1772, %v1888
  %v1890 = vpop.f32.mrf.mxu0
  %v1891 = vpop.f32.mrf.mxu0
  %v1892 = vadd.f32 %v1772, %v1891
  %v1893 = vpop.f32.mrf.mxu0
  %1894 = vmatprep.mubr.bf16.mxu0 0
  %1895 = vmatmul.mubr.bf16.gmra.mxu0 %v1748
  %v1896 = vpop.f32.mrf.mxu0
  %v1897 = vadd.f32 %v1772, %v1896
  %v1898 = vpop.f32.mrf.mxu0
  %v1899 = vpop.f32.mrf.mxu0
  %v1900 = vadd.f32 %v1772, %v1899
  %v1901 = vpop.f32.mrf.mxu0
  %1902 = vmatprep.mubr.bf16.mxu0 0
  %1903 = vmatmul.mubr.bf16.gmra.mxu0 %v1749
  %v1904 = vpop.f32.mrf.mxu0
  %v1905 = vadd.f32 %v1772, %v1904
  %v1906 = vpop.f32.mrf.mxu0
  %v1907 = vpop.f32.mrf.mxu0
  %v1908 = vadd.f32 %v1772, %v1907
  %v1909 = vpop.f32.mrf.mxu0
  %1910 = vmatprep.mubr.bf16.mxu0 0
  %1911 = vmatmul.mubr.bf16.gmra.mxu0 %v1750
  %v1912 = vpop.f32.mrf.mxu0
  %v1913 = vadd.f32 %v1772, %v1912
  %v1914 = vpop.f32.mrf.mxu0
  %v1915 = vpop.f32.mrf.mxu0
  %v1916 = vadd.f32 %v1772, %v1915
  %v1917 = vpop.f32.mrf.mxu0
  %1918 = vdwg.mxu0
  %v1919 = vmax.f32 %v1857, 0.0
  %v1920 = vmax.f32 %v1860, 0.0
  %v1921 = vmax.f32 %v1865, 0.0
  %v1922 = vmax.f32 %v1868, 0.0
  %v1923 = vmax.f32 %v1873, 0.0
  %v1924 = vmax.f32 %v1876, 0.0
  %v1925 = vmax.f32 %v1881, 0.0
  %v1926 = vmax.f32 %v1884, 0.0
  %v1927 = vmax.f32 %v1889, 0.0
  %v1928 = vmax.f32 %v1892, 0.0
  %v1929 = vmax.f32 %v1897, 0.0
  %v1930 = vmax.f32 %v1900, 0.0
  %v1931 = vmax.f32 %v1905, 0.0
  %v1932 = vmax.f32 %v1908, 0.0
  %v1933 = vmax.f32 %v1913, 0.0
  %v1934 = vmax.f32 %v1916, 0.0
  %v1935 = vld [vmem:[%s5] sm:$0xf]
  %v1936 = vpack.c.bf16 %v1920, %v1919
  %v1937 = vpack.c.bf16 %v1922, %v1921
  %v1938 = vpack.c.bf16 %v1924, %v1923
  %v1939 = vpack.c.bf16 %v1926, %v1925
  %v1940 = vpack.c.bf16 %v1928, %v1927
  %v1941 = vpack.c.bf16 %v1930, %v1929
  %v1942 = vpack.c.bf16 %v1932, %v1931
  %v1943 = vpack.c.bf16 %v1934, %v1933
  %1944 = vmatprep.subr.bf16.mxu0 0
  %1945 = vmatpush1.bf16.msra.mxu0 %v1943
  %1946 = vmatprep.subr.bf16.mxu0 0
  %1947 = vmatpush1.bf16.msra.mxu0 %v1942
  %1948 = vmatprep.subr.bf16.mxu0 0
  %1949 = vmatpush1.bf16.msra.mxu0 %v1941
  %1950 = vmatprep.subr.bf16.mxu0 0
  %1951 = vmatpush1.bf16.msra.mxu0 %v1940
  %1952 = vmatprep.subr.bf16.mxu0 0
  %1953 = vmatpush1.bf16.msra.mxu0 %v1939
  %1954 = vmatprep.subr.bf16.mxu0 0
  %1955 = vmatpush1.bf16.msra.mxu0 %v1938
  %1956 = vmatprep.subr.bf16.mxu0 0
  %1957 = vmatpush1.bf16.msra.mxu0 %v1937
  %1958 = vmatprep.subr.bf16.mxu0 0
  %1959 = vmatpush1.bf16.msra.mxu0 %v1936
  %1960 = vmatprep.subr.bf16.mxu0 0
  %1961 = vmatpush2.bf16.msra.mxu0 0
  %1962 = vmatprep.subr.bf16.mxu0 0
  %1963 = vmatpush2.bf16.msra.mxu0 0
  %1964 = vmatprep.subr.bf16.mxu0 0
  %1965 = vmatpush2.bf16.msra.mxu0 0
  %1966 = vmatprep.subr.bf16.mxu0 0
  %1967 = vmatpush2.bf16.msra.mxu0 0
  %1968 = vmatprep.subr.bf16.mxu0 0
  %1969 = vmatpush2.bf16.msra.mxu0 0
  %1970 = vmatprep.subr.bf16.mxu0 0
  %1971 = vmatpush2.bf16.msra.mxu0 0
  %1972 = vmatprep.subr.bf16.mxu0 0
  %1973 = vmatpush2.bf16.msra.mxu0 0
  %1974 = vmatprep.subr.bf16.mxu0 0
  %1975 = vmatpush2.bf16.msra.mxu0 0
  %1976 = vmatprep.mubr.bf16.mxu0 0
  %1977 = vmatmul.mubr.bf16.gmra.mxu0 %v1935
  %v1978 = vpop.f32.mrf.mxu0
  %v1979 = vadd.f32 0.0, %v1978
  %v1980 = vpop.f32.mrf.mxu0
  %v1981 = vpop.f32.mrf.mxu0
  %v1982 = vpop.f32.mrf.mxu0
  %1983 = vdwg.mxu0
  %v1984 = vmax.f32 %v1979, 0.0
  %1985 = vst [vmem:[%s14] sm:$0xff] %v1984
  // Predicated region
  $region58: #{embed_loopy_bp_forward.1} parent=0 // pred_check
    _
  $region59: #{embed_loopy_bp_forward.1} parent=0 // pred_check_branch
    %1987 = sbr.rel (0) target = $region61
  $region60: #{embed_loopy_bp_forward.1} parent=0 // pred_region
    _
  $region61: #{embed_loopy_bp_forward.1} parent=0 // pred_fallthru
    _
  // Predicated region
  $region62: #{embed_loopy_bp_forward.1} parent=0 // pred_check
    _
  $region63: #{embed_loopy_bp_forward.1} parent=0 // pred_check_branch
    %1989 = sbr.rel (0) target = $region65
  $region64: #{embed_loopy_bp_forward.1} parent=0 // pred_region
    _
  $region65: #{embed_loopy_bp_forward.1} parent=0 // pred_fallthru
    _

</llo_original>
